<compile_context>
chip_gen: v5e
topology: v5e:2x2
jax: 0.10.0
libtpu: 0.0.40
codegen_flags: <defaults>
</compile_context>

<pallas_src>
import functools

import jax
import jax.numpy as jnp
import numpy as np
from jax import lax
from jax.experimental import pallas as pl
from jax.experimental.pallas import tpu as pltpu

EPS = 1e-5          # nn.InstanceNorm2d default
NEG_SLOPE = 0.01    # nn.LeakyReLU default


def _round_up(v, m):
    return (v + m - 1) // m * m


def _spade_kernel(x_ref, seg_ref, mask_ref, scale_ref, shift_ref,
                  w1_ref, b1_ref, w23_ref, b23_ref, o_ref, actv_ref,
                  *, TH, Wp, R_last):
    """One (batch, row-tile) grid step, channels-major / spatial-in-lane layout.

    x_ref    : (Cnp, TH*Wp)       f32   raw activation rows of this tile
    seg_ref  : (Clp, (TH+6)*Wp)   bf16  resized segmap, global rows r0-3 .. r0+TH+2
    mask_ref : (1, (TH+2)*Wp)     f32   1.0 on columns < W, 0.0 on width padding
    scale_ref: (Cnp, 1)           f32   inv_std           (hoisted instance-norm)
    shift_ref: (Cnp, 1)           f32   -mean * inv_std
    w1_ref   : (3, Chp, 3*Clp)    bf16  mlp_shared weights, per-ky (Cout, kx*Cin)
    b1_ref   : (Chp, 1)           f32
    w23_ref  : (3, 2*Cnp, 3*Chp)  bf16  mlp_gamma || mlp_beta fused, per-ky
    b23_ref  : (2*Cnp, 1)         f32
    o_ref    : (Cnp, TH*Wp)       f32
    actv_ref : (Chp, (TH+4)*Wp)   bf16  scratch: guard row + (TH+2) actv rows + guard row
    """
    f32 = jnp.float32
    Cnp = o_ref.shape[0]
    Chp = b1_ref.shape[0]
    P1 = (TH + 2) * Wp        # actv window lanes (global rows r0-1 .. r0+TH)
    P0 = TH * Wp              # output tile lanes
    t = pl.program_id(1)

    # ---- mlp_shared: 3x3 conv as 3 accumulated ky-matmuls (K = 3*Clp), bf16 -> f32 ----
    seg = seg_ref[...]
    acc = None
    for ky in range(3):
        base = (ky + 1) * Wp - 1
        slab = jnp.concatenate(
            [seg[:, base + kx: base + kx + P1] for kx in range(3)], axis=0)
        part = jnp.dot(w1_ref[ky], slab, preferred_element_type=f32)
        acc = part if acc is None else acc + part
    actv = acc + b1_ref[...]
    actv = jnp.where(actv >= 0.0, actv, NEG_SLOPE * actv)       # LeakyReLU (f32, v5e-safe)
    actv = actv * mask_ref[...]                                 # zero width-padding columns

    # ---- stage actv (bf16) into the guard-extended scratch buffer ----
    zrow = jnp.zeros((Chp, Wp), actv_ref.dtype)
    actv_ref[:, 0:Wp] = zrow                                    # flat-wrap guard row (top)
    actv_ref[:, (TH + 3) * Wp:(TH + 4) * Wp] = zrow             # flat-wrap guard row (bottom)
    actv_ref[:, Wp:(TH + 3) * Wp] = actv.astype(actv_ref.dtype)

    # zero actv rows outside the real image (emulates conv2/3 zero padding in H)
    @pl.when(t == 0)
    def _():                                                    # global row -1
        actv_ref[:, Wp:2 * Wp] = zrow

    @pl.when(t == pl.num_programs(1) - 1)
    def _():                                                    # global rows >= H
        actv_ref[:, (R_last + 2) * Wp:(TH + 3) * Wp] = jnp.zeros(
            (Chp, (TH + 1 - R_last) * Wp), actv_ref.dtype)

    # ---- mlp_gamma || mlp_beta fused: 3 accumulated ky-matmuls (K = 3*Chp) ----
    av = actv_ref[...]
    gb = None
    for ky in range(3):
        base = (ky + 1) * Wp - 1
        slab = jnp.concatenate(
            [av[:, base + kx: base + kx + P0] for kx in range(3)], axis=0)
        part = jnp.dot(w23_ref[ky], slab, preferred_element_type=f32)
        gb = part if gb is None else gb + part
    gb = gb + b23_ref[...]
    gamma = gb[:Cnp, :]            # aligned sublane split (Cnp is a multiple of 8)
    beta = gb[Cnp:, :]

    # ---- fused instance-norm application + SPADE modulation (f32 elementwise) ----
    xv = x_ref[...]
    o_ref[...] = ((xv * scale_ref[...] + shift_ref[...]) * (1.0 + gamma) + beta
                  ).astype(o_ref.dtype)


def _nearest_resize_nchw(seg_nchw, H, W):
    """PyTorch F.interpolate(mode='nearest') index rule: floor(i * in / out)."""
    _, _, Hs, Ws = seg_nchw.shape
    hi = (jnp.arange(H) * Hs) // H
    wi = (jnp.arange(W) * Ws) // W
    return seg_nchw[:, :, hi[:, None], wi[None, :]]


def _choose_tile_rows(H, Wp, Cnp, Clp, Chp, budget_bytes):
    """Largest row-tile whose per-step working set fits the VMEM budget."""
    per_row = Wp * (
        2 * Cnp * 4 * 2      # x + out tiles, double-buffered, f32
        + Chp * 2            # actv scratch, bf16
        + 3 * Chp * 2        # conv2/3 im2col slab, bf16
        + 3 * Clp * 2        # conv1 im2col slab, bf16
        + Chp * 4            # conv1 f32 accumulator
        + 2 * Cnp * 4        # fused gamma/beta f32 accumulator
    )
    th = int(budget_bytes // max(per_row, 1))
    th = max(8, min(th, 256, H))
    if th >= 16:
        th -= th % 8
    return th


def spade_forward(x_nchw, seg_nchw, params, tile_rows=None):
    """SPADE forward. x_nchw: (B, Cn, H, W); seg_nchw: (B, Cl, Hs, Ws)."""
    B, Cn, H, W = x_nchw.shape
    Cl = seg_nchw.shape[1]
    Ch = params["w1"].shape[-1]
    f32, bf16 = jnp.float32, jnp.bfloat16

    # lane- and sublane-aligned padded sizes
    Wp = _round_up(W + 2, 128)    # row pitch; >= W+2 so +-1 lane taps wrap into zero columns
    Cnp = _round_up(Cn, 8)
    Clp = _round_up(Cl, 8)
    Chp = _round_up(Ch, 8)

    # generation-aware VMEM budget (v7x: 64 MiB physical; v5e/v6e: 128 MiB)
    try:
        vmem_cap = int(pltpu.get_tpu_info().vmem_capacity_bytes)
    except Exception:  # pragma: no cover - conservative fallback
        vmem_cap = 64 * 1024 * 1024
    vmem_limit = min(int(0.75 * vmem_cap), 96 * 1024 * 1024)

    TH = tile_rows if tile_rows is not None else _choose_tile_rows(
        H, Wp, Cnp, Clp, Chp, vmem_limit // 3)
    n_tiles = (H + TH - 1) // TH
    H_pad = n_tiles * TH
    R_last = H - (n_tiles - 1) * TH          # real rows in the last tile (1..TH)

    # ---- hoisted instance-norm statistics (two-pass variance, plain-JAX reduce) ----
    xf = x_nchw.astype(f32)
    mean = jnp.mean(xf, axis=(2, 3))
    var = jnp.mean(jnp.square(xf - mean[:, :, None, None]), axis=(2, 3))
    inv_std = lax.rsqrt(var + EPS)
    scale = jnp.pad(inv_std, ((0, 0), (0, Cnp - Cn)))[:, :, None]            # (B, Cnp, 1)
    shift = jnp.pad(-mean * inv_std, ((0, 0), (0, Cnp - Cn)))[:, :, None]

    # ---- x in channels-major, lane-padded, flattened-row layout ----
    # TODO(synk): in production have the producer emit this layout directly to
    # avoid the extra pad pass over x (and consume the padded output likewise).
    x_lay = jnp.pad(xf, ((0, 0), (0, Cnp - Cn), (0, H_pad - H), (0, Wp - W)))
    x_lay = x_lay.reshape(B, Cnp, H_pad * Wp)

    # ---- resized segmap (bf16) gathered into per-tile halo windows (TH+6 rows) ----
    seg_r = _nearest_resize_nchw(seg_nchw, H, W).astype(bf16)                 # (B, Cl, H, W)
    seg_big = jnp.pad(seg_r, ((0, 0), (0, Clp - Cl),
                              (3, H_pad - H + 3), (0, Wp - W)))               # rows: globals -3 .. H_pad+2
    win = (jnp.arange(n_tiles) * TH)[:, None] + jnp.arange(TH + 6)[None, :]
    seg_tiles = seg_big[:, :, win, :]                                         # (B, Clp, n_tiles, TH+6, Wp)
    seg_tiles = jnp.transpose(seg_tiles, (0, 2, 1, 3, 4)).reshape(
        B, n_tiles, Clp, (TH + 6) * Wp)

    # ---- grid-invariant interior column mask (built once on host, no in-kernel div/mod) ----
    col = (np.arange(Wp) < W).astype(np.float32)
    col_mask = jnp.asarray(np.tile(col, TH + 2)[None, :])                     # (1, (TH+2)*Wp)

    # ---- weights: pad channels, regroup per ky as (Cout, kx*Cin), bf16, fuse gamma/beta ----
    def conv_w(w, cin, cinp, cout, coutp):
        wp = jnp.pad(w.astype(f32), ((0, 0), (0, cinp - cin), (0, coutp - cout)))
        wp = wp.reshape(3, 3, cinp, coutp)                  # (ky, kx, cin, cout)
        return jnp.transpose(wp, (0, 3, 1, 2)).reshape(3, coutp, 3 * cinp)

    w1k = conv_w(params["w1"], Cl, Clp, Ch, Chp).astype(bf16)                 # (3, Chp, 3*Clp)
    w2k = conv_w(params["w2"], Ch, Chp, Cn, Cnp)
    w3k = conv_w(params["w3"], Ch, Chp, Cn, Cnp)
    w23k = jnp.concatenate([w2k, w3k], axis=1).astype(bf16)                   # (3, 2*Cnp, 3*Chp)

    b1p = jnp.pad(params["b1"].astype(f32).reshape(Ch), (0, Chp - Ch)).reshape(Chp, 1)
    b2p = jnp.pad(params["b2"].astype(f32).reshape(Cn), (0, Cnp - Cn))
    b3p = jnp.pad(params["b3"].astype(f32).reshape(Cn), (0, Cnp - Cn))
    b23p = jnp.concatenate([b2p, b3p], axis=0).reshape(2 * Cnp, 1)

    kern = functools.partial(_spade_kernel, TH=TH, Wp=Wp, R_last=R_last)
    out_flat = pl.pallas_call(
        kern,
        out_shape=jax.ShapeDtypeStruct((B, Cnp, H_pad * Wp), f32),
        grid=(B, n_tiles),
        in_specs=[
            pl.BlockSpec((None, Cnp, TH * Wp), lambda b, t: (b, 0, t)),
            pl.BlockSpec((None, None, Clp, (TH + 6) * Wp), lambda b, t: (b, t, 0, 0)),
            pl.BlockSpec((1, (TH + 2) * Wp), lambda b, t: (0, 0)),
            pl.BlockSpec((None, Cnp, 1), lambda b, t: (b, 0, 0)),
            pl.BlockSpec((None, Cnp, 1), lambda b, t: (b, 0, 0)),
            pl.BlockSpec((3, Chp, 3 * Clp), lambda b, t: (0, 0, 0)),
            pl.BlockSpec((Chp, 1), lambda b, t: (0, 0)),
            pl.BlockSpec((3, 2 * Cnp, 3 * Chp), lambda b, t: (0, 0, 0)),
            pl.BlockSpec((2 * Cnp, 1), lambda b, t: (0, 0)),
        ],
        out_specs=pl.BlockSpec((None, Cnp, TH * Wp), lambda b, t: (b, 0, t)),
        scratch_shapes=[pltpu.VMEM((Chp, (TH + 4) * Wp), bf16)],
        compiler_params=pltpu.CompilerParams(
            dimension_semantics=("parallel", "parallel"),
            vmem_limit_bytes=vmem_limit,
        ),
    )(x_lay, seg_tiles, col_mask, scale, shift, w1k, b1p, w23k, b23p)

    return out_flat.reshape(B, Cnp, H_pad, Wp)[:, :Cn, :H, :W]


def spade_reference(x_nchw, seg_nchw, params):
    """Pure-JAX f32 reference (lax.conv) for validation."""
    B, Cn, H, W = x_nchw.shape
    Cl = seg_nchw.shape[1]
    Ch = params["w1"].shape[-1]

    seg_r = _nearest_resize_nchw(seg_nchw, H, W)
    seg = jnp.transpose(seg_r, (0, 2, 3, 1)).astype(jnp.float32)      # NHWC
    x = jnp.transpose(x_nchw, (0, 2, 3, 1)).astype(jnp.float32)

    mean = jnp.mean(x, axis=(1, 2), keepdims=True)
    var = jnp.mean((x - mean) ** 2, axis=(1, 2), keepdims=True)
    normalized = (x - mean) * lax.rsqrt(var + EPS)

    def conv(inp, w_flat, b, cin, cout):
        w = w_flat.reshape(3, 3, cin, cout)
        y = lax.conv_general_dilated(
            inp, w, window_strides=(1, 1), padding="SAME",
            dimension_numbers=("NHWC", "HWIO", "NHWC"))
        return y + b.reshape(1, 1, 1, cout)

    actv = conv(seg, params["w1"], params["b1"], Cl, Ch)
    actv = jnp.where(actv >= 0, actv, NEG_SLOPE * actv)
    gamma = conv(actv, params["w2"], params["b2"], Ch, Cn)
    beta = conv(actv, params["w3"], params["b3"], Ch, Cn)
    out = normalized * (1.0 + gamma) + beta
    return jnp.transpose(out, (0, 3, 1, 2))


def init_params(key, label_nc, norm_nc, hidden_channels):
    ks = jax.random.split(key, 6)
    scale = 0.1
    return {
        "w1": scale * jax.random.normal(ks[0], (9, label_nc, hidden_channels), jnp.float32),
        "b1": scale * jax.random.normal(ks[1], (1, hidden_channels), jnp.float32),
        "w2": scale * jax.random.normal(ks[2], (9, hidden_channels, norm_nc), jnp.float32),
        "b2": scale * jax.random.normal(ks[3], (1, norm_nc), jnp.float32),
        "w3": scale * jax.random.normal(ks[4], (9, hidden_channels, norm_nc), jnp.float32),
        "b3": scale * jax.random.normal(ks[5], (1, norm_nc), jnp.float32),
    }


if __name__ == "__main__":
    # SPADE(label_nc=3, norm_nc=4, kernel_size=3, spatial_dims=2, hidden_channels=32)
    B, Cn, H, W = 2, 4, 16, 16
    Cl, Hs, Ws = 3, 8, 8          # segmap is smaller -> exercises nearest upsample
    Ch = 32

    key = jax.random.PRNGKey(0)
    kx, ks, kp = jax.random.split(key, 3)
    x = jax.random.normal(kx, (B, Cn, H, W), jnp.float32)
    segmap = jax.random.normal(ks, (B, Cl, Hs, Ws), jnp.float32)
    params = init_params(kp, Cl, Cn, Ch)

    # tile_rows=8 -> 2 row tiles per image: exercises the halo / seam / pl.when paths.
    out = jax.block_until_ready(spade_forward(x, segmap, params, tile_rows=8))
    ref = jax.block_until_ready(spade_reference(x, segmap, params))

    assert out.shape == (B, Cn, H, W), out.shape
    max_err = float(jnp.max(jnp.abs(out - ref)))
    # bf16 matmul operands (seg/actv/weights) vs f32 reference -> relaxed tolerance.
    if not np.isfinite(max_err) or max_err > 3e-2:
        raise AssertionError(f"Pallas SPADE mismatch vs reference: max|err|={max_err}")

    print("KERNEL_OK")
</pallas_src>

<mosaic_0001>
module attributes {stable_mosaic.version = 11 : i64} {
  func.func @_spade_kernel(%arg0: i32, %arg1: i32, %arg2: memref<1x8x1024xf32, #tpu.memory_space<vmem>>, %arg3: memref<1x1x8x1792xbf16, #tpu.memory_space<vmem>>, %arg4: memref<1x1280xf32, #tpu.memory_space<vmem>>, %arg5: memref<1x8x1xf32, #tpu.memory_space<vmem>>, %arg6: memref<1x8x1xf32, #tpu.memory_space<vmem>>, %arg7: memref<3x32x24xbf16, #tpu.memory_space<vmem>>, %arg8: memref<32x1xf32, #tpu.memory_space<vmem>>, %arg9: memref<3x16x96xbf16, #tpu.memory_space<vmem>>, %arg10: memref<16x1xf32, #tpu.memory_space<vmem>>, %arg11: memref<1x8x1024xf32, #tpu.memory_space<vmem>>, %arg12: memref<32x1536xbf16, #tpu.memory_space<vmem>>) attributes {dimension_semantics = [#tpu.dimension_semantics<parallel>, #tpu.dimension_semantics<parallel>], iteration_bounds = array<i64: 2, 2>, scalar_prefetch = 0 : i64, scratch_operands = 1 : i64, tpu.core_type = #tpu.core_type<tc>, window_params = [{transform_indices = @transform_0, window_bounds = array<i64: 1, 8, 1024>}, {transform_indices = @transform_1, window_bounds = array<i64: 1, 1, 8, 1792>}, {pipeline_mode = #tpu.pipeline_mode<synchronous>, transform_indices = @transform_2, window_bounds = array<i64: 1, 1280>}, {transform_indices = @transform_3, window_bounds = array<i64: 1, 8, 1>}, {transform_indices = @transform_4, window_bounds = array<i64: 1, 8, 1>}, {pipeline_mode = #tpu.pipeline_mode<synchronous>, transform_indices = @transform_5, window_bounds = array<i64: 3, 32, 24>}, {pipeline_mode = #tpu.pipeline_mode<synchronous>, transform_indices = @transform_6, window_bounds = array<i64: 32, 1>}, {pipeline_mode = #tpu.pipeline_mode<synchronous>, transform_indices = @transform_7, window_bounds = array<i64: 3, 16, 96>}, {pipeline_mode = #tpu.pipeline_mode<synchronous>, transform_indices = @transform_8, window_bounds = array<i64: 16, 1>}, {transform_indices = @transform_9, window_bounds = array<i64: 1, 8, 1024>}]} {
    %c0 = arith.constant 0 : index
    %c0_0 = arith.constant 0 : index
    %c0_1 = arith.constant 0 : index
    %c0_2 = arith.constant 0 : index
    %0 = vector.load %arg3[%c0, %c0_0, %c0_1, %c0_2] : memref<1x1x8x1792xbf16, #tpu.memory_space<vmem>>, vector<1x1x8x1792xbf16>
    %1 = vector.shape_cast %0 : vector<1x1x8x1792xbf16> to vector<8x1792xbf16>
    %2 = vector.extract_strided_slice %1 {offsets = [0, 127], sizes = [8, 1280], strides = [1, 1]} : vector<8x1792xbf16> to vector<8x1280xbf16>
    %3 = vector.extract_strided_slice %1 {offsets = [0, 128], sizes = [8, 1280], strides = [1, 1]} : vector<8x1792xbf16> to vector<8x1280xbf16>
    %4 = vector.extract_strided_slice %1 {offsets = [0, 129], sizes = [8, 1280], strides = [1, 1]} : vector<8x1792xbf16> to vector<8x1280xbf16>
    %5 = tpu.concatenate %2, %3, %4 in 0 : vector<8x1280xbf16>, vector<8x1280xbf16>, vector<8x1280xbf16> -> vector<24x1280xbf16>
    %c0_3 = arith.constant 0 : index
    %c0_4 = arith.constant 0 : index
    %c0_5 = arith.constant 0 : index
    %6 = vector.load %arg7[%c0_3, %c0_4, %c0_5] : memref<3x32x24xbf16, #tpu.memory_space<vmem>>, vector<1x32x24xbf16>
    %7 = vector.shape_cast %6 : vector<1x32x24xbf16> to vector<32x24xbf16>
    %cst = arith.constant dense<0.000000e+00> : vector<32x1280xf32>
    %8 = tpu.matmul %7, %5, %cst {dimension_numbers = #tpu.dot_dimension_numbers<[1], [0], [0], [1], [0, 0, 1, 1], [], []>} : vector<32x24xbf16>, vector<24x1280xbf16>, vector<32x1280xf32> -> vector<32x1280xf32>
    %9 = vector.extract_strided_slice %1 {offsets = [0, 255], sizes = [8, 1280], strides = [1, 1]} : vector<8x1792xbf16> to vector<8x1280xbf16>
    %10 = vector.extract_strided_slice %1 {offsets = [0, 256], sizes = [8, 1280], strides = [1, 1]} : vector<8x1792xbf16> to vector<8x1280xbf16>
    %11 = vector.extract_strided_slice %1 {offsets = [0, 257], sizes = [8, 1280], strides = [1, 1]} : vector<8x1792xbf16> to vector<8x1280xbf16>
    %12 = tpu.concatenate %9, %10, %11 in 0 : vector<8x1280xbf16>, vector<8x1280xbf16>, vector<8x1280xbf16> -> vector<24x1280xbf16>
    %c1 = arith.constant 1 : index
    %c0_6 = arith.constant 0 : index
    %c0_7 = arith.constant 0 : index
    %13 = vector.load %arg7[%c1, %c0_6, %c0_7] : memref<3x32x24xbf16, #tpu.memory_space<vmem>>, vector<1x32x24xbf16>
    %14 = vector.shape_cast %13 : vector<1x32x24xbf16> to vector<32x24xbf16>
    %cst_8 = arith.constant dense<0.000000e+00> : vector<32x1280xf32>
    %15 = tpu.matmul %14, %12, %cst_8 {dimension_numbers = #tpu.dot_dimension_numbers<[1], [0], [0], [1], [0, 0, 1, 1], [], []>} : vector<32x24xbf16>, vector<24x1280xbf16>, vector<32x1280xf32> -> vector<32x1280xf32>
    %16 = arith.addf %8, %15 : vector<32x1280xf32>
    %17 = vector.extract_strided_slice %1 {offsets = [0, 383], sizes = [8, 1280], strides = [1, 1]} : vector<8x1792xbf16> to vector<8x1280xbf16>
    %18 = vector.extract_strided_slice %1 {offsets = [0, 384], sizes = [8, 1280], strides = [1, 1]} : vector<8x1792xbf16> to vector<8x1280xbf16>
    %19 = vector.extract_strided_slice %1 {offsets = [0, 385], sizes = [8, 1280], strides = [1, 1]} : vector<8x1792xbf16> to vector<8x1280xbf16>
    %20 = tpu.concatenate %17, %18, %19 in 0 : vector<8x1280xbf16>, vector<8x1280xbf16>, vector<8x1280xbf16> -> vector<24x1280xbf16>
    %c2 = arith.constant 2 : index
    %c0_9 = arith.constant 0 : index
    %c0_10 = arith.constant 0 : index
    %21 = vector.load %arg7[%c2, %c0_9, %c0_10] : memref<3x32x24xbf16, #tpu.memory_space<vmem>>, vector<1x32x24xbf16>
    %22 = vector.shape_cast %21 : vector<1x32x24xbf16> to vector<32x24xbf16>
    %cst_11 = arith.constant dense<0.000000e+00> : vector<32x1280xf32>
    %23 = tpu.matmul %22, %20, %cst_11 {dimension_numbers = #tpu.dot_dimension_numbers<[1], [0], [0], [1], [0, 0, 1, 1], [], []>} : vector<32x24xbf16>, vector<24x1280xbf16>, vector<32x1280xf32> -> vector<32x1280xf32>
    %24 = arith.addf %16, %23 : vector<32x1280xf32>
    %c0_12 = arith.constant 0 : index
    %c0_13 = arith.constant 0 : index
    %25 = vector.load %arg8[%c0_12, %c0_13] : memref<32x1xf32, #tpu.memory_space<vmem>>, vector<32x1xf32>
    %26 = vector.broadcast %25 : vector<32x1xf32> to vector<32x1280xf32>
    %27 = arith.addf %24, %26 : vector<32x1280xf32>
    %cst_14 = arith.constant 0.000000e+00 : f32
    %28 = vector.broadcast %cst_14 : f32 to vector<32x1280xf32>
    %29 = arith.cmpf oge, %27, %28 : vector<32x1280xf32>
    %cst_15 = arith.constant 0.00999999977 : f32
    %30 = vector.broadcast %cst_15 : f32 to vector<32x1280xf32>
    %31 = arith.mulf %30, %27 : vector<32x1280xf32>
    %32 = arith.select %29, %27, %31 : vector<32x1280xi1>, vector<32x1280xf32>
    %c0_16 = arith.constant 0 : index
    %c0_17 = arith.constant 0 : index
    %33 = vector.load %arg4[%c0_16, %c0_17] : memref<1x1280xf32, #tpu.memory_space<vmem>>, vector<1x1280xf32>
    %34 = vector.broadcast %33 : vector<1x1280xf32> to vector<32x1280xf32>
    %35 = arith.mulf %32, %34 : vector<32x1280xf32>
    %cst_18 = arith.constant 0.000000e+00 : bf16
    %36 = vector.broadcast %cst_18 : bf16 to vector<32x128xbf16>
    %c0_19 = arith.constant 0 : index
    %c0_20 = arith.constant 0 : index
    %37 = vector.load %arg12[%c0_19, %c0_20] : memref<32x1536xbf16, #tpu.memory_space<vmem>>, vector<32x128xbf16>
    tpu.vector_store %arg12[%c0_19, %c0_20], %36 {strides = array<i32>} : memref<32x1536xbf16, #tpu.memory_space<vmem>>, vector<32x128xbf16>,
    %c0_21 = arith.constant 0 : index
    %c1408 = arith.constant 1408 : index
    %38 = vector.load %arg12[%c0_21, %c1408] : memref<32x1536xbf16, #tpu.memory_space<vmem>>, vector<32x128xbf16>
    tpu.vector_store %arg12[%c0_21, %c1408], %36 {strides = array<i32>} : memref<32x1536xbf16, #tpu.memory_space<vmem>>, vector<32x128xbf16>,
    %39 = arith.truncf %35 : vector<32x1280xf32> to vector<32x1280xbf16>
    %c0_22 = arith.constant 0 : index
    %c128 = arith.constant 128 : index
    %40 = vector.load %arg12[%c0_22, %c128] : memref<32x1536xbf16, #tpu.memory_space<vmem>>, vector<32x1280xbf16>
    tpu.vector_store %arg12[%c0_22, %c128], %39 {strides = array<i32>} : memref<32x1536xbf16, #tpu.memory_space<vmem>>, vector<32x1280xbf16>,
    %c0_i32 = arith.constant 0 : i32
    %41 = arith.cmpi eq, %arg1, %c0_i32 : i32
    %42 = arith.extui %41 : i1 to i32
    %c0_i32_23 = arith.constant 0 : i32
    %43 = arith.cmpi ne, %42, %c0_i32_23 : i32
    scf.if %43 {
      %c0_54 = arith.constant 0 : index
      %c128_55 = arith.constant 128 : index
      %93 = vector.load %arg12[%c0_54, %c128_55] : memref<32x1536xbf16, #tpu.memory_space<vmem>>, vector<32x128xbf16>
      tpu.vector_store %arg12[%c0_54, %c128_55], %36 {strides = array<i32>} : memref<32x1536xbf16, #tpu.memory_space<vmem>>, vector<32x128xbf16>,
    } else {
    }
    %c1_i32 = arith.constant 1 : i32
    %44 = arith.cmpi eq, %arg1, %c1_i32 : i32
    %45 = arith.extui %44 : i1 to i32
    %c0_i32_24 = arith.constant 0 : i32
    %46 = arith.cmpi ne, %45, %c0_i32_24 : i32
    scf.if %46 {
      %cst_54 = arith.constant 0.000000e+00 : bf16
      %93 = vector.broadcast %cst_54 : bf16 to vector<32x128xbf16>
      %c0_55 = arith.constant 0 : index
      %c1280 = arith.constant 1280 : index
      %94 = vector.load %arg12[%c0_55, %c1280] : memref<32x1536xbf16, #tpu.memory_space<vmem>>, vector<32x128xbf16>
      tpu.vector_store %arg12[%c0_55, %c1280], %93 {strides = array<i32>} : memref<32x1536xbf16, #tpu.memory_space<vmem>>, vector<32x128xbf16>,
    } else {
    }
    %c0_25 = arith.constant 0 : index
    %c0_26 = arith.constant 0 : index
    %47 = vector.load %arg12[%c0_25, %c0_26] : memref<32x1536xbf16, #tpu.memory_space<vmem>>, vector<32x1536xbf16>
    %48 = vector.extract_strided_slice %47 {offsets = [0, 127], sizes = [32, 1024], strides = [1, 1]} : vector<32x1536xbf16> to vector<32x1024xbf16>
    %49 = vector.extract_strided_slice %47 {offsets = [0, 128], sizes = [32, 1024], strides = [1, 1]} : vector<32x1536xbf16> to vector<32x1024xbf16>
    %50 = vector.extract_strided_slice %47 {offsets = [0, 129], sizes = [32, 1024], strides = [1, 1]} : vector<32x1536xbf16> to vector<32x1024xbf16>
    %51 = tpu.concatenate %48, %49, %50 in 0 : vector<32x1024xbf16>, vector<32x1024xbf16>, vector<32x1024xbf16> -> vector<96x1024xbf16>
    %c0_27 = arith.constant 0 : index
    %c0_28 = arith.constant 0 : index
    %c0_29 = arith.constant 0 : index
    %52 = vector.load %arg9[%c0_27, %c0_28, %c0_29] : memref<3x16x96xbf16, #tpu.memory_space<vmem>>, vector<1x16x96xbf16>
    %53 = vector.shape_cast %52 : vector<1x16x96xbf16> to vector<16x96xbf16>
    %cst_30 = arith.constant dense<0.000000e+00> : vector<16x1024xf32>
    %54 = tpu.matmul %53, %51, %cst_30 {dimension_numbers = #tpu.dot_dimension_numbers<[1], [0], [0], [1], [0, 0, 1, 1], [], []>} : vector<16x96xbf16>, vector<96x1024xbf16>, vector<16x1024xf32> -> vector<16x1024xf32>
    %55 = vector.extract_strided_slice %47 {offsets = [0, 255], sizes = [32, 1024], strides = [1, 1]} : vector<32x1536xbf16> to vector<32x1024xbf16>
    %56 = vector.extract_strided_slice %47 {offsets = [0, 256], sizes = [32, 1024], strides = [1, 1]} : vector<32x1536xbf16> to vector<32x1024xbf16>
    %57 = vector.extract_strided_slice %47 {offsets = [0, 257], sizes = [32, 1024], strides = [1, 1]} : vector<32x1536xbf16> to vector<32x1024xbf16>
    %58 = tpu.concatenate %55, %56, %57 in 0 : vector<32x1024xbf16>, vector<32x1024xbf16>, vector<32x1024xbf16> -> vector<96x1024xbf16>
    %c1_31 = arith.constant 1 : index
    %c0_32 = arith.constant 0 : index
    %c0_33 = arith.constant 0 : index
    %59 = vector.load %arg9[%c1_31, %c0_32, %c0_33] : memref<3x16x96xbf16, #tpu.memory_space<vmem>>, vector<1x16x96xbf16>
    %60 = vector.shape_cast %59 : vector<1x16x96xbf16> to vector<16x96xbf16>
    %cst_34 = arith.constant dense<0.000000e+00> : vector<16x1024xf32>
    %61 = tpu.matmul %60, %58, %cst_34 {dimension_numbers = #tpu.dot_dimension_numbers<[1], [0], [0], [1], [0, 0, 1, 1], [], []>} : vector<16x96xbf16>, vector<96x1024xbf16>, vector<16x1024xf32> -> vector<16x1024xf32>
    %62 = arith.addf %54, %61 : vector<16x1024xf32>
    %63 = vector.extract_strided_slice %47 {offsets = [0, 383], sizes = [32, 1024], strides = [1, 1]} : vector<32x1536xbf16> to vector<32x1024xbf16>
    %64 = vector.extract_strided_slice %47 {offsets = [0, 384], sizes = [32, 1024], strides = [1, 1]} : vector<32x1536xbf16> to vector<32x1024xbf16>
    %65 = vector.extract_strided_slice %47 {offsets = [0, 385], sizes = [32, 1024], strides = [1, 1]} : vector<32x1536xbf16> to vector<32x1024xbf16>
    %66 = tpu.concatenate %63, %64, %65 in 0 : vector<32x1024xbf16>, vector<32x1024xbf16>, vector<32x1024xbf16> -> vector<96x1024xbf16>
    %c2_35 = arith.constant 2 : index
    %c0_36 = arith.constant 0 : index
    %c0_37 = arith.constant 0 : index
    %67 = vector.load %arg9[%c2_35, %c0_36, %c0_37] : memref<3x16x96xbf16, #tpu.memory_space<vmem>>, vector<1x16x96xbf16>
    %68 = vector.shape_cast %67 : vector<1x16x96xbf16> to vector<16x96xbf16>
    %cst_38 = arith.constant dense<0.000000e+00> : vector<16x1024xf32>
    %69 = tpu.matmul %68, %66, %cst_38 {dimension_numbers = #tpu.dot_dimension_numbers<[1], [0], [0], [1], [0, 0, 1, 1], [], []>} : vector<16x96xbf16>, vector<96x1024xbf16>, vector<16x1024xf32> -> vector<16x1024xf32>
    %70 = arith.addf %62, %69 : vector<16x1024xf32>
    %c0_39 = arith.constant 0 : index
    %c0_40 = arith.constant 0 : index
    %71 = vector.load %arg10[%c0_39, %c0_40] : memref<16x1xf32, #tpu.memory_space<vmem>>, vector<16x1xf32>
    %72 = vector.broadcast %71 : vector<16x1xf32> to vector<16x1024xf32>
    %73 = arith.addf %70, %72 : vector<16x1024xf32>
    %74 = vector.extract_strided_slice %73 {offsets = [0, 0], sizes = [8, 1024], strides = [1, 1]} : vector<16x1024xf32> to vector<8x1024xf32>
    %75 = vector.extract_strided_slice %73 {offsets = [8, 0], sizes = [8, 1024], strides = [1, 1]} : vector<16x1024xf32> to vector<8x1024xf32>
    %c0_41 = arith.constant 0 : index
    %c0_42 = arith.constant 0 : index
    %c0_43 = arith.constant 0 : index
    %76 = vector.load %arg2[%c0_41, %c0_42, %c0_43] : memref<1x8x1024xf32, #tpu.memory_space<vmem>>, vector<1x8x1024xf32>
    %77 = vector.shape_cast %76 : vector<1x8x1024xf32> to vector<8x1024xf32>
    %c0_44 = arith.constant 0 : index
    %c0_45 = arith.constant 0 : index
    %c0_46 = arith.constant 0 : index
    %78 = vector.load %arg5[%c0_44, %c0_45, %c0_46] : memref<1x8x1xf32, #tpu.memory_space<vmem>>, vector<1x8x1xf32>
    %79 = vector.shape_cast %78 : vector<1x8x1xf32> to vector<8x1xf32>
    %80 = vector.broadcast %79 : vector<8x1xf32> to vector<8x1024xf32>
    %81 = arith.mulf %77, %80 : vector<8x1024xf32>
    %c0_47 = arith.constant 0 : index
    %c0_48 = arith.constant 0 : index
    %c0_49 = arith.constant 0 : index
    %82 = vector.load %arg6[%c0_47, %c0_48, %c0_49] : memref<1x8x1xf32, #tpu.memory_space<vmem>>, vector<1x8x1xf32>
    %83 = vector.shape_cast %82 : vector<1x8x1xf32> to vector<8x1xf32>
    %84 = vector.broadcast %83 : vector<8x1xf32> to vector<8x1024xf32>
    %85 = arith.addf %81, %84 : vector<8x1024xf32>
    %cst_50 = arith.constant 1.000000e+00 : f32
    %86 = vector.broadcast %cst_50 : f32 to vector<8x1024xf32>
    %87 = arith.addf %86, %74 : vector<8x1024xf32>
    %88 = arith.mulf %85, %87 : vector<8x1024xf32>
    %89 = arith.addf %88, %75 : vector<8x1024xf32>
    %c0_51 = arith.constant 0 : index
    %c0_52 = arith.constant 0 : index
    %c0_53 = arith.constant 0 : index
    %90 = vector.load %arg11[%c0_51, %c0_52, %c0_53] : memref<1x8x1024xf32, #tpu.memory_space<vmem>>, vector<1x8x1024xf32>
    %91 = vector.shape_cast %90 : vector<1x8x1024xf32> to vector<8x1024xf32>
    %92 = vector.shape_cast %89 : vector<8x1024xf32> to vector<1x8x1024xf32>
    tpu.vector_store %arg11[%c0_51, %c0_52, %c0_53], %92 {strides = array<i32>} : memref<1x8x1024xf32, #tpu.memory_space<vmem>>, vector<1x8x1024xf32>,
    return
  }
  func.func @transform_0(%arg0: i32, %arg1: i32) -> (i32, i32, i32) {
    %c0_i32 = arith.constant 0 : i32
    %c0_i32_0 = arith.constant 0 : i32
    return %arg0, %c0_i32, %arg1 : i32, i32, i32
  }
  func.func @transform_1(%arg0: i32, %arg1: i32) -> (i32, i32, i32, i32) {
    %c0_i32 = arith.constant 0 : i32
    %c0_i32_0 = arith.constant 0 : i32
    %c0_i32_1 = arith.constant 0 : i32
    return %arg0, %arg1, %c0_i32, %c0_i32_0 : i32, i32, i32, i32
  }
  func.func @transform_2(%arg0: i32, %arg1: i32) -> (i32, i32) {
    %c0_i32 = arith.constant 0 : i32
    %c0_i32_0 = arith.constant 0 : i32
    %c0_i32_1 = arith.constant 0 : i32
    return %c0_i32, %c0_i32_0 : i32, i32
  }
  func.func @transform_3(%arg0: i32, %arg1: i32) -> (i32, i32, i32) {
    %c0_i32 = arith.constant 0 : i32
    %c0_i32_0 = arith.constant 0 : i32
    %c0_i32_1 = arith.constant 0 : i32
    return %arg0, %c0_i32, %c0_i32_0 : i32, i32, i32
  }
  func.func @transform_4(%arg0: i32, %arg1: i32) -> (i32, i32, i32) {
    %c0_i32 = arith.constant 0 : i32
    %c0_i32_0 = arith.constant 0 : i32
    %c0_i32_1 = arith.constant 0 : i32
    return %arg0, %c0_i32, %c0_i32_0 : i32, i32, i32
  }
  func.func @transform_5(%arg0: i32, %arg1: i32) -> (i32, i32, i32) {
    %c0_i32 = arith.constant 0 : i32
    %c0_i32_0 = arith.constant 0 : i32
    %c0_i32_1 = arith.constant 0 : i32
    %c0_i32_2 = arith.constant 0 : i32
    return %c0_i32, %c0_i32_0, %c0_i32_1 : i32, i32, i32
  }
  func.func @transform_6(%arg0: i32, %arg1: i32) -> (i32, i32) {
    %c0_i32 = arith.constant 0 : i32
    %c0_i32_0 = arith.constant 0 : i32
    %c0_i32_1 = arith.constant 0 : i32
    return %c0_i32, %c0_i32_0 : i32, i32
  }
  func.func @transform_7(%arg0: i32, %arg1: i32) -> (i32, i32, i32) {
    %c0_i32 = arith.constant 0 : i32
    %c0_i32_0 = arith.constant 0 : i32
    %c0_i32_1 = arith.constant 0 : i32
    %c0_i32_2 = arith.constant 0 : i32
    return %c0_i32, %c0_i32_0, %c0_i32_1 : i32, i32, i32
  }
  func.func @transform_8(%arg0: i32, %arg1: i32) -> (i32, i32) {
    %c0_i32 = arith.constant 0 : i32
    %c0_i32_0 = arith.constant 0 : i32
    %c0_i32_1 = arith.constant 0 : i32
    return %c0_i32, %c0_i32_0 : i32, i32
  }
  func.func @transform_9(%arg0: i32, %arg1: i32) -> (i32, i32, i32) {
    %c0_i32 = arith.constant 0 : i32
    %c0_i32_0 = arith.constant 0 : i32
    return %arg0, %c0_i32, %arg1 : i32, i32, i32
  }
}

</mosaic_0001>

<llo_original>
// kernel: tpu_custom_call.1
$region0: #{tpu_custom_call.1}
  #allocation0 [shape = 'u32[]', space=smem, size = 0x4, offset = 0x4, fixed_abs, tag = 'smem constant byte address 0x4 - core index']
  #allocation1 [shape = 'u32[72,128]{1,0:T(1,128)}', space=vmem, size = 0x9000, scoped, tag = 'internal scratch']
  #allocation2 [shape = 'bf16[32,1536]{1,0:T(8,128)(2,1)}', space=vmem, size = 0x18000, scoped, tag = 'scratch operand']
  %s0 = inlined_call_operand.hbm [shape: f32[2,8,2048], index: 0, kind: input, shape index: {}]
  %s1 = inlined_call_operand.hbm [shape: bf16[2,2,8,1792], index: 1, kind: input, shape index: {}]
  %s2 = inlined_call_operand.vmem [shape: f32[1,1280], index: 2, kind: input, shape index: {}]
  %s3 = inlined_call_operand.vmem [shape: f32[2,8,1], index: 3, kind: input, shape index: {}]
  %s4 = inlined_call_operand.vmem [shape: f32[2,8,1], index: 4, kind: input, shape index: {}]
  %s5 = inlined_call_operand.vmem [shape: bf16[3,32,24], index: 5, kind: input, shape index: {}]
  %s6 = inlined_call_operand.vmem [shape: f32[32,1], index: 6, kind: input, shape index: {}]
  %s7 = inlined_call_operand.vmem [shape: bf16[3,16,96], index: 7, kind: input, shape index: {}]
  %s8 = inlined_call_operand.vmem [shape: f32[16,1], index: 8, kind: input, shape index: {}]
  %s9 = inlined_call_operand.hbm [shape: f32[2,8,2048], index: 9, kind: output, shape index: {}]
  %s10 = sld [smem:[#allocation0]]
  $region85: #{tpu_custom_call.1} parent=0
    _
  %s12 = ssub.s32 1, %s10
  %s13 = scalar_select 0, %s12, %s10
  $region1: #{tpu_custom_call.1} parent=0
    #allocation3 [shape = 'u8[65536]{0}', space=vmem, size = 0x10000, scoped, tag = 'input window, operand 0']
    #allocation4 [shape = 's32[2]{0}', space=sflag, size = 0x8, scoped, tag = 'scoped memory for tpu_custom_call.1']
    #allocation5 [shape = 's32[2]{0}', space=sflag, size = 0x8, scoped, tag = 'scoped memory for tpu_custom_call.1']
    #allocation6 [shape = 'u8[57344]{0}', space=vmem, size = 0xe000, scoped, tag = 'input window, operand 1']
    #allocation7 [shape = 's32[2]{0}', space=sflag, size = 0x8, scoped, tag = 'scoped memory for tpu_custom_call.1']
    #allocation8 [shape = 'u8[65536]{0}', space=vmem, size = 0x10000, scoped, tag = 'output window, operand 0']
    %14 = vsyncpa [#allocation4], 0
    %s15 = scalar_lea.sflag [#allocation4], 1
    %16 = vsyncpa %s15, 0
    %17 = vsyncpa [#allocation7], 0
    %s18 = scalar_lea.sflag [#allocation7], 1
    %19 = vsyncpa %s18, 0
    %20 = vsyncpa [#allocation5], 0
    %s21 = scalar_lea.sflag [#allocation5], 1
    %22 = vsyncpa %s21, 0
    loop: start=0, step=1, limit=6
    $region2: #{tpu_custom_call.1} parent=1 // loop_pre_header
      _
    $region3: #{tpu_custom_call.1} parent=1 // loop_header
      %s24 = sphi 0, %s28
      %p25 = scmp.ge.s32.totalorder %s24, 6
      %s31 = sphi 0, %s43
      %s32 = sphi 0, %s39
      %s33 = sphi 0, %s31
      %s34 = sphi 0, %s32
      %s35 = sphi 0, %s33
      %s36 = sphi 0, %s34
      %s48 = sphi 0, %s50
      %s51 = sphi 0, %s48
      %s52 = sphi 0, %s51
      %s68 = sphi 0, %s52
      %s76 = sphi 0, %s78
      %s79 = sphi 0, %s76
      %s80 = sphi 0, %s79
      %s96 = sphi 0, %s80
      %s100 = sphi 0, %s100
      %s102 = sphi 0, %s100
      %s103 = sphi 0, %s102
      %s117 = sphi 0, %s103
      %s123 = sphi 0, %s125
      %s126 = sphi 0, %s123
      %s127 = sphi 0, %s126
      %s143 = sphi 0, %s127
      %s149 = sphi 0, %s151
      %s152 = sphi 0, %s149
      %s153 = sphi 0, %s152
      %s169 = sphi 0, %s153
      %s173 = sphi 0, %s173
      %s175 = sphi 0, %s173
      %s176 = sphi 0, %s175
      %s190 = sphi 0, %s176
      %s194 = sphi 0, %s194
      %s196 = sphi 0, %s194
      %s197 = sphi 0, %s196
      %s211 = sphi 0, %s197
      %s215 = sphi 0, %s215
      %s217 = sphi 0, %s215
      %s218 = sphi 0, %s217
      %s232 = sphi 0, %s218
      %s236 = sphi 0, %s236
      %s238 = sphi 0, %s236
      %s239 = sphi 0, %s238
      %s253 = sphi 0, %s239
      %s261 = sphi 0, %s263
      %s264 = sphi 0, %s261
      %s265 = sphi 0, %s264
      %s281 = sphi 0, %s265
    $region4: #{tpu_custom_call.1} parent=1 // loop_header_branch
      %27 = sbr.rel (%p25) target = $region8
    $region5: #{tpu_custom_call.1} parent=1 // loop_body
      %s29 = ssub.s32 %s24, 1
      %s30 = ssub.s32 %s24, 2
      %s37 = sadd.s32 1, %s32
      %p38 = scmp.ge.s32.totalorder %s37, 2
      %s39 = scalar_select %p38, 0, %s37
      %s40 = sadd.s32 1, %s31
      %s41 = scalar_select %p38, %s40, %s31
      %p42 = scmp.ge.s32.totalorder %s41, 2
      %s43 = scalar_select %p42, 0, %s41
      %s44 = ssub.s32 %s31, %s43
      %s45 = ssub.s32 %s32, %s39
      %s46 = sor.u32 %s44, %s45
      %p47 = scmp.eq.s32.totalorder %s46, 0
      %s49 = sadd.s32 %s48, 1
      %s50 = scalar_select %p47, %s48, %s49
      %p53 = pneg %p47
      %p54 = scmp.eq.s32.totalorder %s24, 3
      %p55 = por %p53, %p54
      %p56 = scmp.ne.s32.totalorder %s48, %s51
      %p57 = scmp.eq.s32.totalorder %s24, 0
      %p58 = por %p56, %p57
      %p59 = scmp.ne.s32.totalorder %s48, %s51
      %p60 = scmp.eq.s32.totalorder %s29, 3
      %p61 = por %p59, %p60
      %p62 = scmp.ne.s32.totalorder %s51, %s52
      %p63 = scmp.eq.s32.totalorder %s29, 0
      %p64 = por %p62, %p63
      %p65 = scmp.ne.s32.totalorder %s51, %s52
      %p66 = scmp.eq.s32.totalorder %s30, 3
      %p67 = por %p65, %p66
      %p69 = scmp.ne.s32.totalorder %s52, %s68
      %p70 = scmp.eq.s32.totalorder %s30, 0
      %p71 = por %p69, %p70
      %s72 = ssub.s32 %s31, %s43
      %s73 = ssub.s32 %s32, %s39
      %s74 = sor.u32 %s72, %s73
      %p75 = scmp.eq.s32.totalorder %s74, 0
      %s77 = sadd.s32 %s76, 1
      %s78 = scalar_select %p75, %s76, %s77
      %p81 = pneg %p75
      %p82 = scmp.eq.s32.totalorder %s24, 3
      %p83 = por %p81, %p82
      %p84 = scmp.ne.s32.totalorder %s76, %s79
      %p85 = scmp.eq.s32.totalorder %s24, 0
      %p86 = por %p84, %p85
      %p87 = scmp.ne.s32.totalorder %s76, %s79
      %p88 = scmp.eq.s32.totalorder %s29, 3
      %p89 = por %p87, %p88
      %p90 = scmp.ne.s32.totalorder %s79, %s80
      %p91 = scmp.eq.s32.totalorder %s29, 0
      %p92 = por %p90, %p91
      %p93 = scmp.ne.s32.totalorder %s79, %s80
      %p94 = scmp.eq.s32.totalorder %s30, 3
      %p95 = por %p93, %p94
      %p97 = scmp.ne.s32.totalorder %s80, %s96
      %p98 = scmp.eq.s32.totalorder %s30, 0
      %p99 = por %p97, %p98
      %s101 = sadd.s32 %s100, 1
      %p104 = scmp.eq.s32.totalorder %s24, 3
      %p105 = scmp.ne.s32.totalorder %s100, %s102
      %p106 = scmp.eq.s32.totalorder %s24, 0
      %p107 = por %p105, %p106
      %p108 = scmp.ne.s32.totalorder %s100, %s102
      %p109 = scmp.eq.s32.totalorder %s29, 3
      %p110 = por %p108, %p109
      %p111 = scmp.ne.s32.totalorder %s102, %s103
      %p112 = scmp.eq.s32.totalorder %s29, 0
      %p113 = por %p111, %p112
      %p114 = scmp.ne.s32.totalorder %s102, %s103
      %p115 = scmp.eq.s32.totalorder %s30, 3
      %p116 = por %p114, %p115
      %p118 = scmp.ne.s32.totalorder %s103, %s117
      %p119 = scmp.eq.s32.totalorder %s30, 0
      %p120 = por %p118, %p119
      %s121 = ssub.s32 %s31, %s43
      %p122 = scmp.eq.s32.totalorder %s121, 0
      %s124 = sadd.s32 %s123, 1
      %s125 = scalar_select %p122, %s123, %s124
      %p128 = pneg %p122
      %p129 = scmp.eq.s32.totalorder %s24, 3
      %p130 = por %p128, %p129
      %p131 = scmp.ne.s32.totalorder %s123, %s126
      %p132 = scmp.eq.s32.totalorder %s24, 0
      %p133 = por %p131, %p132
      %p134 = scmp.ne.s32.totalorder %s123, %s126
      %p135 = scmp.eq.s32.totalorder %s29, 3
      %p136 = por %p134, %p135
      %p137 = scmp.ne.s32.totalorder %s126, %s127
      %p138 = scmp.eq.s32.totalorder %s29, 0
      %p139 = por %p137, %p138
      %p140 = scmp.ne.s32.totalorder %s126, %s127
      %p141 = scmp.eq.s32.totalorder %s30, 3
      %p142 = por %p140, %p141
      %p144 = scmp.ne.s32.totalorder %s127, %s143
      %p145 = scmp.eq.s32.totalorder %s30, 0
      %p146 = por %p144, %p145
      %s147 = ssub.s32 %s31, %s43
      %p148 = scmp.eq.s32.totalorder %s147, 0
      %s150 = sadd.s32 %s149, 1
      %s151 = scalar_select %p148, %s149, %s150
      %p154 = pneg %p148
      %p155 = scmp.eq.s32.totalorder %s24, 3
      %p156 = por %p154, %p155
      %p157 = scmp.ne.s32.totalorder %s149, %s152
      %p158 = scmp.eq.s32.totalorder %s24, 0
      %p159 = por %p157, %p158
      %p160 = scmp.ne.s32.totalorder %s149, %s152
      %p161 = scmp.eq.s32.totalorder %s29, 3
      %p162 = por %p160, %p161
      %p163 = scmp.ne.s32.totalorder %s152, %s153
      %p164 = scmp.eq.s32.totalorder %s29, 0
      %p165 = por %p163, %p164
      %p166 = scmp.ne.s32.totalorder %s152, %s153
      %p167 = scmp.eq.s32.totalorder %s30, 3
      %p168 = por %p166, %p167
      %p170 = scmp.ne.s32.totalorder %s153, %s169
      %p171 = scmp.eq.s32.totalorder %s30, 0
      %p172 = por %p170, %p171
      %s174 = sadd.s32 %s173, 1
      %p177 = scmp.eq.s32.totalorder %s24, 3
      %p178 = scmp.ne.s32.totalorder %s173, %s175
      %p179 = scmp.eq.s32.totalorder %s24, 0
      %p180 = por %p178, %p179
      %p181 = scmp.ne.s32.totalorder %s173, %s175
      %p182 = scmp.eq.s32.totalorder %s29, 3
      %p183 = por %p181, %p182
      %p184 = scmp.ne.s32.totalorder %s175, %s176
      %p185 = scmp.eq.s32.totalorder %s29, 0
      %p186 = por %p184, %p185
      %p187 = scmp.ne.s32.totalorder %s175, %s176
      %p188 = scmp.eq.s32.totalorder %s30, 3
      %p189 = por %p187, %p188
      %p191 = scmp.ne.s32.totalorder %s176, %s190
      %p192 = scmp.eq.s32.totalorder %s30, 0
      %p193 = por %p191, %p192
      %s195 = sadd.s32 %s194, 1
      %p198 = scmp.eq.s32.totalorder %s24, 3
      %p199 = scmp.ne.s32.totalorder %s194, %s196
      %p200 = scmp.eq.s32.totalorder %s24, 0
      %p201 = por %p199, %p200
      %p202 = scmp.ne.s32.totalorder %s194, %s196
      %p203 = scmp.eq.s32.totalorder %s29, 3
      %p204 = por %p202, %p203
      %p205 = scmp.ne.s32.totalorder %s196, %s197
      %p206 = scmp.eq.s32.totalorder %s29, 0
      %p207 = por %p205, %p206
      %p208 = scmp.ne.s32.totalorder %s196, %s197
      %p209 = scmp.eq.s32.totalorder %s30, 3
      %p210 = por %p208, %p209
      %p212 = scmp.ne.s32.totalorder %s197, %s211
      %p213 = scmp.eq.s32.totalorder %s30, 0
      %p214 = por %p212, %p213
      %s216 = sadd.s32 %s215, 1
      %p219 = scmp.eq.s32.totalorder %s24, 3
      %p220 = scmp.ne.s32.totalorder %s215, %s217
      %p221 = scmp.eq.s32.totalorder %s24, 0
      %p222 = por %p220, %p221
      %p223 = scmp.ne.s32.totalorder %s215, %s217
      %p224 = scmp.eq.s32.totalorder %s29, 3
      %p225 = por %p223, %p224
      %p226 = scmp.ne.s32.totalorder %s217, %s218
      %p227 = scmp.eq.s32.totalorder %s29, 0
      %p228 = por %p226, %p227
      %p229 = scmp.ne.s32.totalorder %s217, %s218
      %p230 = scmp.eq.s32.totalorder %s30, 3
      %p231 = por %p229, %p230
      %p233 = scmp.ne.s32.totalorder %s218, %s232
      %p234 = scmp.eq.s32.totalorder %s30, 0
      %p235 = por %p233, %p234
      %s237 = sadd.s32 %s236, 1
      %p240 = scmp.eq.s32.totalorder %s24, 3
      %p241 = scmp.ne.s32.totalorder %s236, %s238
      %p242 = scmp.eq.s32.totalorder %s24, 0
      %p243 = por %p241, %p242
      %p244 = scmp.ne.s32.totalorder %s236, %s238
      %p245 = scmp.eq.s32.totalorder %s29, 3
      %p246 = por %p244, %p245
      %p247 = scmp.ne.s32.totalorder %s238, %s239
      %p248 = scmp.eq.s32.totalorder %s29, 0
      %p249 = por %p247, %p248
      %p250 = scmp.ne.s32.totalorder %s238, %s239
      %p251 = scmp.eq.s32.totalorder %s30, 3
      %p252 = por %p250, %p251
      %p254 = scmp.ne.s32.totalorder %s239, %s253
      %p255 = scmp.eq.s32.totalorder %s30, 0
      %p256 = por %p254, %p255
      %s257 = ssub.s32 %s31, %s43
      %s258 = ssub.s32 %s32, %s39
      %s259 = sor.u32 %s257, %s258
      %p260 = scmp.eq.s32.totalorder %s259, 0
      %s262 = sadd.s32 %s261, 1
      %s263 = scalar_select %p260, %s261, %s262
      %p266 = pneg %p260
      %p267 = scmp.eq.s32.totalorder %s24, 3
      %p268 = por %p266, %p267
      %p269 = scmp.ne.s32.totalorder %s261, %s264
      %p270 = scmp.eq.s32.totalorder %s24, 0
      %p271 = por %p269, %p270
      %p272 = scmp.ne.s32.totalorder %s261, %s264
      %p273 = scmp.eq.s32.totalorder %s29, 3
      %p274 = por %p272, %p273
      %p275 = scmp.ne.s32.totalorder %s264, %s265
      %p276 = scmp.eq.s32.totalorder %s29, 0
      %p277 = por %p275, %p276
      %p278 = scmp.ne.s32.totalorder %s264, %s265
      %p279 = scmp.eq.s32.totalorder %s30, 3
      %p280 = por %p278, %p279
      %p282 = scmp.ne.s32.totalorder %s265, %s281
      %p283 = scmp.eq.s32.totalorder %s30, 0
      %p284 = por %p282, %p283
      %p285 = scmp.le.s32.totalorder 1, %s24
      %p286 = scmp.lt.s32.totalorder %s24, 5
      %p287 = pnand %p285, %p286
      %p288 = pneg %p287
      // Predicated region
      $region9: #{tpu_custom_call.1} parent=5 // pred_check
        _
      $region10: #{tpu_custom_call.1} parent=5 // pred_check_branch
        %290 = sbr.rel (%p287) target = $region12
      $region11: #{tpu_custom_call.1} parent=5 // pred_region
        %s291 = ssub.s32 %s24, 1
        // Predicated region
        $region13: #{tpu_custom_call.1} parent=11 // pred_check
          %p292 = pneg %p113
        $region14: #{tpu_custom_call.1} parent=11 // pred_check_branch
          %294 = sbr.rel (%p292) target = $region16
        $region15: #{tpu_custom_call.1} parent=11 // pred_region
          _
        $region16: #{tpu_custom_call.1} parent=11 // pred_fallthru
          _
        // Predicated region
        $region17: #{tpu_custom_call.1} parent=11 // pred_check
          %p295 = pneg %p186
        $region18: #{tpu_custom_call.1} parent=11 // pred_check_branch
          %297 = sbr.rel (%p295) target = $region20
        $region19: #{tpu_custom_call.1} parent=11 // pred_region
          _
        $region20: #{tpu_custom_call.1} parent=11 // pred_fallthru
          _
        // Predicated region
        $region21: #{tpu_custom_call.1} parent=11 // pred_check
          %p298 = pneg %p207
        $region22: #{tpu_custom_call.1} parent=11 // pred_check_branch
          %300 = sbr.rel (%p298) target = $region24
        $region23: #{tpu_custom_call.1} parent=11 // pred_region
          _
        $region24: #{tpu_custom_call.1} parent=11 // pred_fallthru
          _
        // Predicated region
        $region25: #{tpu_custom_call.1} parent=11 // pred_check
          %p301 = pneg %p228
        $region26: #{tpu_custom_call.1} parent=11 // pred_check_branch
          %303 = sbr.rel (%p301) target = $region28
        $region27: #{tpu_custom_call.1} parent=11 // pred_region
          _
        $region28: #{tpu_custom_call.1} parent=11 // pred_fallthru
          _
        // Predicated region
        $region29: #{tpu_custom_call.1} parent=11 // pred_check
          %p304 = pneg %p249
        $region30: #{tpu_custom_call.1} parent=11 // pred_check_branch
          %306 = sbr.rel (%p304) target = $region32
        $region31: #{tpu_custom_call.1} parent=11 // pred_region
          _
        $region32: #{tpu_custom_call.1} parent=11 // pred_fallthru
          _
      $region12: #{tpu_custom_call.1} parent=5 // pred_fallthru
        _
      %p307 = scmp.lt.s32.totalorder %s24, 4
      // Predicated region
      $region33: #{tpu_custom_call.1} parent=5 // pred_check
        %p308 = pneg %p307
      $region34: #{tpu_custom_call.1} parent=5 // pred_check_branch
        %310 = sbr.rel (%p308) target = $region36
      $region35: #{tpu_custom_call.1} parent=5 // pred_region
        // Predicated region
        $region37: #{tpu_custom_call.1} parent=35 // pred_check
          %p311 = pneg %p58
        $region38: #{tpu_custom_call.1} parent=35 // pred_check_branch
          %313 = sbr.rel (%p311) target = $region40
        $region39: #{tpu_custom_call.1} parent=35 // pred_region
          %s314 = sand.u32 %s48, 1
          %s315 = scalar_lea.sflag [#allocation4], %s314
          %s316 = sand.u32 %s48, 1
          %s317 = smul.addr %s316, 64
          %s318 = scalar_lea.vmem [#allocation3], %s317
          %s319 = smul.u32 8, %s32
          %321 = vsyncadd %s315, 0
          %s322 = smul.addr %s31, 16
          %s323 = sadd.s32 %s319, %s322
          %s324 = smul.addr %s323, 8
          %s325 = scalar_lea.hbm %s0, %s324
          %s327 = sshll.u32 %s325, 4
          %s328 = int_to_ptr.hbm [resolvable:$true] %s327
          %s329 = sshll.u32 %s318, 4
          %s330 = int_to_ptr.vmem [resolvable:$true] %s329
          %332 = dma.hbm_to_vmem [thread:$0]  %s328, 1024, %s330, %s315
        $region40: #{tpu_custom_call.1} parent=35 // pred_fallthru
          _
        // Predicated region
        $region41: #{tpu_custom_call.1} parent=35 // pred_check
          %p333 = pneg %p86
        $region42: #{tpu_custom_call.1} parent=35 // pred_check_branch
          %335 = sbr.rel (%p333) target = $region44
        $region43: #{tpu_custom_call.1} parent=35 // pred_region
          %s336 = sand.u32 %s76, 1
          %s337 = scalar_lea.sflag [#allocation7], %s336
          %s338 = sand.u32 %s76, 1
          %s339 = smul.addr %s338, 56
          %s340 = scalar_lea.vmem [#allocation6], %s339
          %342 = vsyncadd %s337, 0
          %s343 = smul.addr %s32, 14
          %s344 = smul.addr %s31, 28
          %s345 = sadd.s32 %s343, %s344
          %s346 = smul.addr %s345, 4
          %s347 = scalar_lea.hbm %s1, %s346
          %s349 = sshll.u32 %s347, 4
          %s350 = int_to_ptr.hbm [resolvable:$true] %s349
          %s351 = sshll.u32 %s340, 4
          %s352 = int_to_ptr.vmem [resolvable:$true] %s351
          %354 = dma.hbm_to_vmem [thread:$0]  %s350, 896, %s352, %s337
        $region44: #{tpu_custom_call.1} parent=35 // pred_fallthru
          _
        // Predicated region
        $region45: #{tpu_custom_call.1} parent=35 // pred_check
          %p355 = pneg %p133
        $region46: #{tpu_custom_call.1} parent=35 // pred_check_branch
          %357 = sbr.rel (%p355) target = $region48
        $region47: #{tpu_custom_call.1} parent=35 // pred_region
          %p358 = scmp.lt.s32.totalorder %s31, 1
          %s359 = scalar_select %p358, %s31, 1
          %s360 = smul.addr %s359, 8
          %s361 = scalar_lea.vmem %s3, %s360
        $region48: #{tpu_custom_call.1} parent=35 // pred_fallthru
          _
        // Predicated region
        $region49: #{tpu_custom_call.1} parent=35 // pred_check
          %p362 = pneg %p159
        $region50: #{tpu_custom_call.1} parent=35 // pred_check_branch
          %364 = sbr.rel (%p362) target = $region52
        $region51: #{tpu_custom_call.1} parent=35 // pred_region
          %p365 = scmp.lt.s32.totalorder %s31, 1
          %s366 = scalar_select %p365, %s31, 1
          %s367 = smul.addr %s366, 8
          %s368 = scalar_lea.vmem %s4, %s367
        $region52: #{tpu_custom_call.1} parent=35 // pred_fallthru
          _
      $region36: #{tpu_custom_call.1} parent=5 // pred_fallthru
        _
      %p369 = scmp.le.s32.totalorder 1, %s24
      %p370 = scmp.lt.s32.totalorder %s24, 5
      %p371 = pnand %p369, %p370
      %p372 = pneg %p371
      // Predicated region
      $region53: #{tpu_custom_call.1} parent=5 // pred_check
        _
      $region54: #{tpu_custom_call.1} parent=5 // pred_check_branch
        %374 = sbr.rel (%p371) target = $region56
      $region55: #{tpu_custom_call.1} parent=5 // pred_region
        %s375 = ssub.s32 %s24, 1
        %s376 = sand.u32 %s51, 1
        %s377 = scalar_lea.sflag [#allocation4], %s376
        %s378 = sand.u32 %s51, 1
        %s379 = smul.addr %s378, 64
        %s380 = scalar_lea.vmem [#allocation3], %s379
        // Predicated region
        $region57: #{tpu_custom_call.1} parent=55 // pred_check
          %p381 = pneg %p64
        $region58: #{tpu_custom_call.1} parent=55 // pred_check_branch
          %383 = sbr.rel (%p381) target = $region60
        $region59: #{tpu_custom_call.1} parent=55 // pred_region
          %385 = dma.done %s377, 1024
        $region60: #{tpu_custom_call.1} parent=55 // pred_fallthru
          _
        %s386 = sand.u32 %s79, 1
        %s387 = scalar_lea.sflag [#allocation7], %s386
        %s388 = sand.u32 %s79, 1
        %s389 = smul.addr %s388, 56
        %s390 = scalar_lea.vmem [#allocation6], %s389
        // Predicated region
        $region61: #{tpu_custom_call.1} parent=55 // pred_check
          %p391 = pneg %p92
        $region62: #{tpu_custom_call.1} parent=55 // pred_check_branch
          %393 = sbr.rel (%p391) target = $region64
        $region63: #{tpu_custom_call.1} parent=55 // pred_region
          %395 = dma.done %s387, 896
        $region64: #{tpu_custom_call.1} parent=55 // pred_fallthru
          _
        %s396 = sand.u32 %s51, 1
        %s397 = scalar_lea.sflag [#allocation4], %s396
        %s398 = sand.u32 %s51, 1
        %s399 = smul.addr %s398, 64
        %s400 = scalar_lea.vmem [#allocation3], %s399
        %p401 = pneg %p64
        %p402 = pneg %p61
        %s403 = sand.u32 %s79, 1
        %s404 = scalar_lea.sflag [#allocation7], %s403
        %s405 = sand.u32 %s79, 1
        %s406 = smul.addr %s405, 56
        %s407 = scalar_lea.vmem [#allocation6], %s406
        %p408 = pneg %p92
        %p409 = pneg %p89
        %p410 = pneg %p113
        %p411 = pneg %p110
        %p412 = scmp.lt.s32.totalorder %s33, 1
        %s413 = scalar_select %p412, %s33, 1
        %s414 = smul.addr %s413, 8
        %s415 = scalar_lea.vmem %s3, %s414
        %p416 = pneg %p139
        %p417 = pneg %p136
        %p418 = scmp.lt.s32.totalorder %s33, 1
        %s419 = scalar_select %p418, %s33, 1
        %s420 = smul.addr %s419, 8
        %s421 = scalar_lea.vmem %s4, %s420
        %p422 = pneg %p165
        %p423 = pneg %p162
        %p424 = pneg %p186
        %p425 = pneg %p183
        %p426 = pneg %p207
        %p427 = pneg %p204
        %p428 = pneg %p228
        %p429 = pneg %p225
        %p430 = pneg %p249
        %p431 = pneg %p246
        %p432 = pneg %p277
        %p433 = pneg %p274
        %s434 = sand.u32 %s264, 1
        %s435 = scalar_lea.sflag [#allocation5], %s434
        %s436 = sand.u32 %s264, 1
        %s437 = smul.addr %s436, 64
        %s438 = scalar_lea.vmem [#allocation8], %s437
        %s439 = smul.u32 8, %s34
        %p440 = scmp.lt.s32.totalorder %s33, 1
        %s441 = scalar_select %p440, %s33, 1
        %s442 = smul.addr %s441, 8
        %s443 = scalar_lea.vmem %s3, %s442
        %p444 = scmp.lt.s32.totalorder %s33, 1
        %s445 = scalar_select %p444, %s33, 1
        %s446 = smul.addr %s445, 8
        %s447 = scalar_lea.vmem %s4, %s446
        %s448 = smul.u32 8, %s34
        %v450 = vld [vmem:[%s390] sm:$0xff]
        %v451 = vld [vmem:[%s390 + $0x8] sm:$0xff]
        %v452 = vld [vmem:[%s390 + $0x10] sm:$0xff]
        %v453 = vld [vmem:[%s390 + $0x18] sm:$0xff]
        %v454 = vld [vmem:[%s390 + $0x20] sm:$0xff]
        %v455 = vld [vmem:[%s390 + $0x28] sm:$0xff]
        %v456 = vld [vmem:[%s390 + $0x30] sm:$0xff]
        %v463 = vunpack.c.l.b16 %v450
        %v464 = vunpack.c.h.b16 %v450
        %v465 = vunpack.c.l.b16 %v451
        %v466 = vunpack.c.h.b16 %v451
        %v467 = vunpack.c.l.b16 %v452
        %v468 = vunpack.c.h.b16 %v452
        %v469 = vunpack.c.l.b16 %v453
        %v470 = vunpack.c.h.b16 %v453
        %v471 = vunpack.c.l.b16 %v454
        %v472 = vunpack.c.h.b16 %v454
        %v473 = vunpack.c.l.b16 %v455
        %v474 = vpack.c.b16 %v463, %v463
        %v475 = vpack.c.b16 %v464, %v464
        %v476 = vpack.c.b16 %v465, %v465
        %v477 = vpack.c.b16 %v466, %v466
        %v478 = vpack.c.b16 %v467, %v467
        %v479 = vpack.c.b16 %v468, %v468
        %v480 = vpack.c.b16 %v469, %v469
        %v481 = vpack.c.b16 %v470, %v470
        %v482 = vpack.c.b16 %v471, %v471
        %v483 = vpack.c.b16 %v472, %v472
        %v484 = vpack.c.b16 %v473, %v473
        %485 = vrot.lane.b32.xlu0 %v475, 127
        %v486 = vpop.permute.xlu0 %485
        %487 = vrot.lane.b32.xlu0 %v476, 127
        %v488 = vpop.permute.xlu0 %487
        %489 = vrot.lane.b32.xlu0 %v477, 127
        %v490 = vpop.permute.xlu0 %489
        %491 = vrot.lane.b32.xlu0 %v478, 127
        %v492 = vpop.permute.xlu0 %491
        %493 = vrot.lane.b32.xlu0 %v479, 127
        %v494 = vpop.permute.xlu0 %493
        %495 = vrot.lane.b32.xlu0 %v480, 127
        %v496 = vpop.permute.xlu0 %495
        %497 = vrot.lane.b32.xlu0 %v481, 127
        %v498 = vpop.permute.xlu0 %497
        %499 = vrot.lane.b32.xlu0 %v482, 127
        %v500 = vpop.permute.xlu0 %499
        %501 = vrot.lane.b32.xlu0 %v483, 127
        %v502 = vpop.permute.xlu0 %501
        %503 = vrot.lane.b32.xlu0 %v484, 127
        %v504 = vpop.permute.xlu0 %503
        %vm505 = vcmask 1039360
        %v506 = vsel %vm505, %v486, %v488
        %v507 = vsel %vm505, %v488, %v490
        %v508 = vsel %vm505, %v490, %v492
        %v509 = vsel %vm505, %v492, %v494
        %v510 = vsel %vm505, %v494, %v496
        %v511 = vsel %vm505, %v496, %v498
        %v512 = vsel %vm505, %v498, %v500
        %v513 = vsel %vm505, %v500, %v502
        %v514 = vsel %vm505, %v502, %v504
        %v515 = vunpack.c.h.b16 %v455
        %v516 = vpack.c.b16 %v515, %v515
        %517 = vrot.lane.b32.xlu0 %v475, 126
        %v518 = vpop.permute.xlu0 %517
        %519 = vrot.lane.b32.xlu0 %v476, 126
        %v520 = vpop.permute.xlu0 %519
        %521 = vrot.lane.b32.xlu0 %v477, 126
        %v522 = vpop.permute.xlu0 %521
        %523 = vrot.lane.b32.xlu0 %v478, 126
        %v524 = vpop.permute.xlu0 %523
        %525 = vrot.lane.b32.xlu0 %v479, 126
        %v526 = vpop.permute.xlu0 %525
        %527 = vrot.lane.b32.xlu0 %v480, 126
        %v528 = vpop.permute.xlu0 %527
        %529 = vrot.lane.b32.xlu0 %v481, 126
        %v530 = vpop.permute.xlu0 %529
        %531 = vrot.lane.b32.xlu0 %v482, 126
        %v532 = vpop.permute.xlu0 %531
        %533 = vrot.lane.b32.xlu0 %v483, 126
        %v534 = vpop.permute.xlu0 %533
        %535 = vrot.lane.b32.xlu0 %v484, 126
        %v536 = vpop.permute.xlu0 %535
        %537 = vrot.lane.b32.xlu0 %v516, 126
        %v538 = vpop.permute.xlu0 %537
        %vm539 = vcmask 1031168
        %v540 = vsel %vm539, %v518, %v520
        %v541 = vsel %vm539, %v520, %v522
        %v542 = vsel %vm539, %v522, %v524
        %v543 = vsel %vm539, %v524, %v526
        %v544 = vsel %vm539, %v526, %v528
        %v545 = vsel %vm539, %v528, %v530
        %v546 = vsel %vm539, %v530, %v532
        %v547 = vsel %vm539, %v532, %v534
        %v548 = vsel %vm539, %v534, %v536
        %v549 = vsel %vm539, %v536, %v538
        %vm550 = vcmask 1043456
        %v553 = vsel %vm550, %v474, %v486
        %v556 = vsel %vm550, %v475, %v506
        %v559 = vsel %vm550, %v476, %v507
        %v562 = vsel %vm550, %v477, %v508
        %v565 = vsel %vm550, %v478, %v509
        %v568 = vsel %vm550, %v479, %v510
        %v571 = vsel %vm550, %v480, %v511
        %v574 = vsel %vm550, %v481, %v512
        %v577 = vsel %vm550, %v482, %v513
        %v580 = vsel %vm550, %v483, %v514
        %v583 = vsel %vm550, %v484, %v504
        %v584 = vld [vmem:[%s5] sm:$0xf]
        %v585 = vld [vmem:[%s5 + $0x4] sm:$0xf]
        %v586 = vld [vmem:[%s5 + $0x8] sm:$0xf]
        %v587 = vld [vmem:[%s5 + $0xc] sm:$0xf]
        %588 = vrot.lane.b32.xlu0 %v475, 1
        %v589 = vpop.permute.xlu0 %588
        %590 = vrot.lane.b32.xlu0 %v476, 1
        %v591 = vpop.permute.xlu0 %590
        %592 = vrot.lane.b32.xlu0 %v477, 1
        %v593 = vpop.permute.xlu0 %592
        %594 = vrot.lane.b32.xlu0 %v478, 1
        %v595 = vpop.permute.xlu0 %594
        %596 = vrot.lane.b32.xlu0 %v479, 1
        %v597 = vpop.permute.xlu0 %596
        %598 = vrot.lane.b32.xlu0 %v480, 1
        %v599 = vpop.permute.xlu0 %598
        %600 = vrot.lane.b32.xlu0 %v481, 1
        %v601 = vpop.permute.xlu0 %600
        %602 = vrot.lane.b32.xlu0 %v482, 1
        %v603 = vpop.permute.xlu0 %602
        %604 = vrot.lane.b32.xlu0 %v483, 1
        %v605 = vpop.permute.xlu0 %604
        %606 = vrot.lane.b32.xlu0 %v484, 1
        %v607 = vpop.permute.xlu0 %606
        %608 = vrot.lane.b32.xlu0 %v516, 1
        %v609 = vpop.permute.xlu0 %608
        %vm610 = vcmask 7168
        %v611 = vsel %vm610, %v589, %v591
        %v612 = vsel %vm610, %v591, %v593
        %v613 = vsel %vm610, %v593, %v595
        %v614 = vsel %vm610, %v595, %v597
        %v615 = vsel %vm610, %v597, %v599
        %v616 = vsel %vm610, %v599, %v601
        %v617 = vsel %vm610, %v601, %v603
        %v618 = vsel %vm610, %v603, %v605
        %v619 = vsel %vm610, %v605, %v607
        %v620 = vsel %vm610, %v607, %v609
        %v622 = vunpack.c.l.b16 %v456
        %v623 = vpack.c.b16 %v622, %v622
        %624 = vrot.lane.b32.xlu0 %v516, 127
        %v625 = vpop.permute.xlu0 %624
        %626 = vrot.lane.b32.xlu0 %v623, 127
        %v627 = vpop.permute.xlu0 %626
        %v628 = vsel %vm505, %v504, %v625
        %v629 = vsel %vm505, %v625, %v627
        %v631 = vsel %vm550, %v611, %v476
        %v634 = vsel %vm550, %v612, %v477
        %v637 = vsel %vm550, %v613, %v478
        %v640 = vsel %vm550, %v614, %v479
        %v643 = vsel %vm550, %v615, %v480
        %v646 = vsel %vm550, %v616, %v481
        %v649 = vsel %vm550, %v617, %v482
        %v652 = vsel %vm550, %v618, %v483
        %v655 = vsel %vm550, %v619, %v484
        %v659 = vsel %vm550, %v620, %v516
        %s661 = scalar_lea.vmem %s5, 16
        %v662 = vld [vmem:[%s661] sm:$0xf]
        %v663 = vld [vmem:[%s661 + $0x4] sm:$0xf]
        %v664 = vld [vmem:[%s661 + $0x8] sm:$0xf]
        %v665 = vld [vmem:[%s661 + $0xc] sm:$0xf]
        %v670 = vunpack.c.l.b16 %v662
        %v671 = vunpack.c.l.b16 %v663
        %v672 = vunpack.c.l.b16 %v664
        %v673 = vunpack.c.l.b16 %v665
        %v674 = vpack.c.b16 %v671, %v670
        %v675 = vpack.c.b16 %v673, %v672
        %vm676 = vcmask 195584
        %v678 = vsel %vm676, %v674, 0
        %v681 = vsel %vm676, %v675, 0
        %v683 = vsel %vm550, %v507, 0
        %v685 = vsel %vm550, %v508, 0
        %v687 = vsel %vm550, %v509, 0
        %v689 = vsel %vm550, %v510, 0
        %v691 = vsel %vm550, %v511, 0
        %v693 = vsel %vm550, %v512, 0
        %v695 = vsel %vm550, %v513, 0
        %v697 = vsel %vm550, %v514, 0
        %v700 = vsel %vm550, %v628, 0
        %v703 = vsel %vm550, %v629, 0
        %705 = vmatpush.bf16.msra.mxu0 0
        %706 = vmatpush.bf16.msra.mxu0 0
        %707 = vmatpush.bf16.msra.mxu0 0
        %708 = vmatpush.bf16.msra.mxu0 0
        %709 = vmatpush.bf16.msra.mxu0 0
        %710 = vmatpush.bf16.msra.mxu0 0
        %711 = vmatpush.bf16.msra.mxu0 %v683
        %712 = vmatpush.bf16.msra.mxu0 %v631
        %713 = vmatmul.bf16.gmra.mxu0 %v678
        %v714 = vpop.f32.mrf.mxu0
        %v715 = vadd.f32 0.0, %v714
        %v716 = vpop.f32.mrf.mxu0
        %v717 = vadd.f32 0.0, %v716
        %718 = vmatmul.bf16.gmra.mxu0 %v681
        %v719 = vpop.f32.mrf.mxu0
        %v720 = vadd.f32 0.0, %v719
        %v721 = vpop.f32.mrf.mxu0
        %v722 = vadd.f32 0.0, %v721
        %723 = vdwg.mxu0
        %724 = vmatpush.bf16.msra.mxu0 0
        %725 = vmatpush.bf16.msra.mxu0 0
        %726 = vmatpush.bf16.msra.mxu0 0
        %727 = vmatpush.bf16.msra.mxu0 0
        %728 = vmatpush.bf16.msra.mxu0 0
        %729 = vmatpush.bf16.msra.mxu0 0
        %730 = vmatpush.bf16.msra.mxu0 %v685
        %731 = vmatpush.bf16.msra.mxu0 %v634
        %732 = vmatmul.bf16.gmra.mxu0 %v678
        %v733 = vpop.f32.mrf.mxu0
        %v734 = vadd.f32 0.0, %v733
        %v735 = vpop.f32.mrf.mxu0
        %v736 = vadd.f32 0.0, %v735
        %737 = vmatmul.bf16.gmra.mxu0 %v681
        %v738 = vpop.f32.mrf.mxu0
        %v739 = vadd.f32 0.0, %v738
        %v740 = vpop.f32.mrf.mxu0
        %v741 = vadd.f32 0.0, %v740
        %742 = vdwg.mxu0
        %743 = vmatpush.bf16.msra.mxu0 0
        %744 = vmatpush.bf16.msra.mxu0 0
        %745 = vmatpush.bf16.msra.mxu0 0
        %746 = vmatpush.bf16.msra.mxu0 0
        %747 = vmatpush.bf16.msra.mxu0 0
        %748 = vmatpush.bf16.msra.mxu0 0
        %749 = vmatpush.bf16.msra.mxu0 %v687
        %750 = vmatpush.bf16.msra.mxu0 %v637
        %751 = vmatmul.bf16.gmra.mxu0 %v678
        %v752 = vpop.f32.mrf.mxu0
        %v753 = vadd.f32 0.0, %v752
        %v754 = vpop.f32.mrf.mxu0
        %v755 = vadd.f32 0.0, %v754
        %756 = vmatmul.bf16.gmra.mxu0 %v681
        %v757 = vpop.f32.mrf.mxu0
        %v758 = vadd.f32 0.0, %v757
        %v759 = vpop.f32.mrf.mxu0
        %v760 = vadd.f32 0.0, %v759
        %761 = vdwg.mxu0
        %762 = vmatpush.bf16.msra.mxu0 0
        %763 = vmatpush.bf16.msra.mxu0 0
        %764 = vmatpush.bf16.msra.mxu0 0
        %765 = vmatpush.bf16.msra.mxu0 0
        %766 = vmatpush.bf16.msra.mxu0 0
        %767 = vmatpush.bf16.msra.mxu0 0
        %768 = vmatpush.bf16.msra.mxu0 %v689
        %769 = vmatpush.bf16.msra.mxu0 %v640
        %770 = vmatmul.bf16.gmra.mxu0 %v678
        %v771 = vpop.f32.mrf.mxu0
        %v772 = vadd.f32 0.0, %v771
        %v773 = vpop.f32.mrf.mxu0
        %v774 = vadd.f32 0.0, %v773
        %775 = vmatmul.bf16.gmra.mxu0 %v681
        %v776 = vpop.f32.mrf.mxu0
        %v777 = vadd.f32 0.0, %v776
        %v778 = vpop.f32.mrf.mxu0
        %v779 = vadd.f32 0.0, %v778
        %780 = vdwg.mxu0
        %781 = vmatpush.bf16.msra.mxu0 0
        %782 = vmatpush.bf16.msra.mxu0 0
        %783 = vmatpush.bf16.msra.mxu0 0
        %784 = vmatpush.bf16.msra.mxu0 0
        %785 = vmatpush.bf16.msra.mxu0 0
        %786 = vmatpush.bf16.msra.mxu0 0
        %787 = vmatpush.bf16.msra.mxu0 %v691
        %788 = vmatpush.bf16.msra.mxu0 %v643
        %789 = vmatmul.bf16.gmra.mxu0 %v678
        %v790 = vpop.f32.mrf.mxu0
        %v791 = vadd.f32 0.0, %v790
        %v792 = vpop.f32.mrf.mxu0
        %v793 = vadd.f32 0.0, %v792
        %794 = vmatmul.bf16.gmra.mxu0 %v681
        %v795 = vpop.f32.mrf.mxu0
        %v796 = vadd.f32 0.0, %v795
        %v797 = vpop.f32.mrf.mxu0
        %v798 = vadd.f32 0.0, %v797
        %799 = vdwg.mxu0
        %800 = vmatpush.bf16.msra.mxu0 0
        %801 = vmatpush.bf16.msra.mxu0 0
        %802 = vmatpush.bf16.msra.mxu0 0
        %803 = vmatpush.bf16.msra.mxu0 0
        %804 = vmatpush.bf16.msra.mxu0 0
        %805 = vmatpush.bf16.msra.mxu0 0
        %806 = vmatpush.bf16.msra.mxu0 %v693
        %807 = vmatpush.bf16.msra.mxu0 %v646
        %808 = vmatmul.bf16.gmra.mxu0 %v678
        %v809 = vpop.f32.mrf.mxu0
        %v810 = vadd.f32 0.0, %v809
        %v811 = vpop.f32.mrf.mxu0
        %v812 = vadd.f32 0.0, %v811
        %813 = vmatmul.bf16.gmra.mxu0 %v681
        %v814 = vpop.f32.mrf.mxu0
        %v815 = vadd.f32 0.0, %v814
        %v816 = vpop.f32.mrf.mxu0
        %v817 = vadd.f32 0.0, %v816
        %818 = vdwg.mxu0
        %819 = vmatpush.bf16.msra.mxu0 0
        %820 = vmatpush.bf16.msra.mxu0 0
        %821 = vmatpush.bf16.msra.mxu0 0
        %822 = vmatpush.bf16.msra.mxu0 0
        %823 = vmatpush.bf16.msra.mxu0 0
        %824 = vmatpush.bf16.msra.mxu0 0
        %825 = vmatpush.bf16.msra.mxu0 %v695
        %826 = vmatpush.bf16.msra.mxu0 %v649
        %827 = vmatmul.bf16.gmra.mxu0 %v678
        %v828 = vpop.f32.mrf.mxu0
        %v829 = vadd.f32 0.0, %v828
        %v830 = vpop.f32.mrf.mxu0
        %v831 = vadd.f32 0.0, %v830
        %832 = vmatmul.bf16.gmra.mxu0 %v681
        %v833 = vpop.f32.mrf.mxu0
        %v834 = vadd.f32 0.0, %v833
        %v835 = vpop.f32.mrf.mxu0
        %v836 = vadd.f32 0.0, %v835
        %837 = vdwg.mxu0
        %838 = vmatpush.bf16.msra.mxu0 0
        %839 = vmatpush.bf16.msra.mxu0 0
        %840 = vmatpush.bf16.msra.mxu0 0
        %841 = vmatpush.bf16.msra.mxu0 0
        %842 = vmatpush.bf16.msra.mxu0 0
        %843 = vmatpush.bf16.msra.mxu0 0
        %844 = vmatpush.bf16.msra.mxu0 %v697
        %845 = vmatpush.bf16.msra.mxu0 %v652
        %846 = vmatmul.bf16.gmra.mxu0 %v678
        %v847 = vpop.f32.mrf.mxu0
        %v848 = vadd.f32 0.0, %v847
        %v849 = vpop.f32.mrf.mxu0
        %v850 = vadd.f32 0.0, %v849
        %851 = vmatmul.bf16.gmra.mxu0 %v681
        %v852 = vpop.f32.mrf.mxu0
        %v853 = vadd.f32 0.0, %v852
        %v854 = vpop.f32.mrf.mxu0
        %v855 = vadd.f32 0.0, %v854
        %856 = vdwg.mxu0
        %857 = vmatpush.bf16.msra.mxu0 0
        %858 = vmatpush.bf16.msra.mxu0 0
        %859 = vmatpush.bf16.msra.mxu0 0
        %860 = vmatpush.bf16.msra.mxu0 0
        %861 = vmatpush.bf16.msra.mxu0 0
        %862 = vmatpush.bf16.msra.mxu0 0
        %863 = vmatpush.bf16.msra.mxu0 %v700
        %864 = vmatpush.bf16.msra.mxu0 %v655
        %865 = vmatmul.bf16.gmra.mxu0 %v678
        %v866 = vpop.f32.mrf.mxu0
        %v867 = vadd.f32 0.0, %v866
        %v868 = vpop.f32.mrf.mxu0
        %v869 = vadd.f32 0.0, %v868
        %870 = vmatmul.bf16.gmra.mxu0 %v681
        %v871 = vpop.f32.mrf.mxu0
        %v872 = vadd.f32 0.0, %v871
        %v873 = vpop.f32.mrf.mxu0
        %v874 = vadd.f32 0.0, %v873
        %875 = vdwg.mxu0
        %876 = vmatpush.bf16.msra.mxu0 0
        %877 = vmatpush.bf16.msra.mxu0 0
        %878 = vmatpush.bf16.msra.mxu0 0
        %879 = vmatpush.bf16.msra.mxu0 0
        %880 = vmatpush.bf16.msra.mxu0 0
        %881 = vmatpush.bf16.msra.mxu0 0
        %882 = vmatpush.bf16.msra.mxu0 %v703
        %883 = vmatpush.bf16.msra.mxu0 %v659
        %884 = vmatmul.bf16.gmra.mxu0 %v678
        %v885 = vpop.f32.mrf.mxu0
        %v886 = vadd.f32 0.0, %v885
        %v887 = vpop.f32.mrf.mxu0
        %v888 = vadd.f32 0.0, %v887
        %889 = vmatmul.bf16.gmra.mxu0 %v681
        %v890 = vpop.f32.mrf.mxu0
        %v891 = vadd.f32 0.0, %v890
        %v892 = vpop.f32.mrf.mxu0
        %v893 = vadd.f32 0.0, %v892
        %894 = vdwg.mxu0
        %v899 = vunpack.c.l.b16 %v584
        %v900 = vunpack.c.l.b16 %v585
        %v901 = vunpack.c.l.b16 %v586
        %v902 = vunpack.c.l.b16 %v587
        %v903 = vpack.c.b16 %v900, %v899
        %v904 = vpack.c.b16 %v902, %v901
        %916 = vrot.lane.b32.xlu0 %v553, 1
        %v917 = vpop.permute.xlu0 %916
        %918 = vrot.lane.b32.xlu0 %v556, 1
        %v919 = vpop.permute.xlu0 %918
        %920 = vrot.lane.b32.xlu0 %v559, 1
        %v921 = vpop.permute.xlu0 %920
        %922 = vrot.lane.b32.xlu0 %v562, 1
        %v923 = vpop.permute.xlu0 %922
        %924 = vrot.lane.b32.xlu0 %v565, 1
        %v925 = vpop.permute.xlu0 %924
        %926 = vrot.lane.b32.xlu0 %v568, 1
        %v927 = vpop.permute.xlu0 %926
        %928 = vrot.lane.b32.xlu0 %v571, 1
        %v929 = vpop.permute.xlu0 %928
        %930 = vrot.lane.b32.xlu0 %v574, 1
        %v931 = vpop.permute.xlu0 %930
        %932 = vrot.lane.b32.xlu0 %v577, 1
        %v933 = vpop.permute.xlu0 %932
        %934 = vrot.lane.b32.xlu0 %v580, 1
        %v935 = vpop.permute.xlu0 %934
        %936 = vrot.lane.b32.xlu0 %v583, 1
        %v937 = vpop.permute.xlu0 %936
        %938 = vrot.lane.b32.xlu0 %v518, 1
        %v939 = vpop.permute.xlu0 %938
        %940 = vrot.lane.b32.xlu0 %v540, 1
        %v941 = vpop.permute.xlu0 %940
        %942 = vrot.lane.b32.xlu0 %v541, 1
        %v943 = vpop.permute.xlu0 %942
        %944 = vrot.lane.b32.xlu0 %v542, 1
        %v945 = vpop.permute.xlu0 %944
        %946 = vrot.lane.b32.xlu0 %v543, 1
        %v947 = vpop.permute.xlu0 %946
        %948 = vrot.lane.b32.xlu0 %v544, 1
        %v949 = vpop.permute.xlu0 %948
        %950 = vrot.lane.b32.xlu0 %v545, 1
        %v951 = vpop.permute.xlu0 %950
        %952 = vrot.lane.b32.xlu0 %v546, 1
        %v953 = vpop.permute.xlu0 %952
        %954 = vrot.lane.b32.xlu0 %v547, 1
        %v955 = vpop.permute.xlu0 %954
        %956 = vrot.lane.b32.xlu0 %v548, 1
        %v957 = vpop.permute.xlu0 %956
        %958 = vrot.lane.b32.xlu0 %v549, 1
        %v959 = vpop.permute.xlu0 %958
        %v960 = vsel %vm610, %v917, %v919
        %v961 = vsel %vm610, %v919, %v921
        %v962 = vsel %vm610, %v921, %v923
        %v963 = vsel %vm610, %v923, %v925
        %v964 = vsel %vm610, %v925, %v927
        %v965 = vsel %vm610, %v927, %v929
        %v966 = vsel %vm610, %v929, %v931
        %v967 = vsel %vm610, %v931, %v933
        %v968 = vsel %vm610, %v933, %v935
        %v969 = vsel %vm610, %v935, %v937
        %v970 = vsel %vm610, %v939, %v941
        %v971 = vsel %vm610, %v941, %v943
        %v972 = vsel %vm610, %v943, %v945
        %v973 = vsel %vm610, %v945, %v947
        %v974 = vsel %vm610, %v947, %v949
        %v975 = vsel %vm610, %v949, %v951
        %v976 = vsel %vm610, %v951, %v953
        %v977 = vsel %vm610, %v953, %v955
        %v978 = vsel %vm610, %v955, %v957
        %v979 = vsel %vm610, %v957, %v959
        %v991 = vsel %vm676, %v903, 0
        %v994 = vsel %vm676, %v904, 0
        %v997 = vsel %vm550, %v970, 0
        %v1000 = vsel %vm550, %v971, 0
        %v1003 = vsel %vm550, %v972, 0
        %v1006 = vsel %vm550, %v973, 0
        %v1009 = vsel %vm550, %v974, 0
        %v1012 = vsel %vm550, %v975, 0
        %v1015 = vsel %vm550, %v976, 0
        %v1018 = vsel %vm550, %v977, 0
        %v1021 = vsel %vm550, %v978, 0
        %v1024 = vsel %vm550, %v979, 0
        %1026 = vmatpush.bf16.msra.mxu0 0
        %1027 = vmatpush.bf16.msra.mxu0 0
        %1028 = vmatpush.bf16.msra.mxu0 0
        %1029 = vmatpush.bf16.msra.mxu0 0
        %1030 = vmatpush.bf16.msra.mxu0 0
        %1031 = vmatpush.bf16.msra.mxu0 0
        %1032 = vmatpush.bf16.msra.mxu0 %v997
        %1033 = vmatpush.bf16.msra.mxu0 %v960
        %1034 = vmatmul.bf16.gmra.mxu0 %v991
        %v1035 = vpop.f32.mrf.mxu0
        %v1036 = vadd.f32 %v715, %v1035
        %v1037 = vpop.f32.mrf.mxu0
        %v1038 = vadd.f32 %v717, %v1037
        %1039 = vmatmul.bf16.gmra.mxu0 %v994
        %v1040 = vpop.f32.mrf.mxu0
        %v1041 = vadd.f32 %v720, %v1040
        %v1042 = vpop.f32.mrf.mxu0
        %v1043 = vadd.f32 %v722, %v1042
        %1044 = vdwg.mxu0
        %1045 = vmatpush.bf16.msra.mxu0 0
        %1046 = vmatpush.bf16.msra.mxu0 0
        %1047 = vmatpush.bf16.msra.mxu0 0
        %1048 = vmatpush.bf16.msra.mxu0 0
        %1049 = vmatpush.bf16.msra.mxu0 0
        %1050 = vmatpush.bf16.msra.mxu0 0
        %1051 = vmatpush.bf16.msra.mxu0 %v1000
        %1052 = vmatpush.bf16.msra.mxu0 %v961
        %1053 = vmatmul.bf16.gmra.mxu0 %v991
        %v1054 = vpop.f32.mrf.mxu0
        %v1055 = vadd.f32 %v734, %v1054
        %v1056 = vpop.f32.mrf.mxu0
        %v1057 = vadd.f32 %v736, %v1056
        %1058 = vmatmul.bf16.gmra.mxu0 %v994
        %v1059 = vpop.f32.mrf.mxu0
        %v1060 = vadd.f32 %v739, %v1059
        %v1061 = vpop.f32.mrf.mxu0
        %v1062 = vadd.f32 %v741, %v1061
        %1063 = vdwg.mxu0
        %1064 = vmatpush.bf16.msra.mxu0 0
        %1065 = vmatpush.bf16.msra.mxu0 0
        %1066 = vmatpush.bf16.msra.mxu0 0
        %1067 = vmatpush.bf16.msra.mxu0 0
        %1068 = vmatpush.bf16.msra.mxu0 0
        %1069 = vmatpush.bf16.msra.mxu0 0
        %1070 = vmatpush.bf16.msra.mxu0 %v1003
        %1071 = vmatpush.bf16.msra.mxu0 %v962
        %1072 = vmatmul.bf16.gmra.mxu0 %v991
        %v1073 = vpop.f32.mrf.mxu0
        %v1074 = vadd.f32 %v753, %v1073
        %v1075 = vpop.f32.mrf.mxu0
        %v1076 = vadd.f32 %v755, %v1075
        %1077 = vmatmul.bf16.gmra.mxu0 %v994
        %v1078 = vpop.f32.mrf.mxu0
        %v1079 = vadd.f32 %v758, %v1078
        %v1080 = vpop.f32.mrf.mxu0
        %v1081 = vadd.f32 %v760, %v1080
        %1082 = vdwg.mxu0
        %1083 = vmatpush.bf16.msra.mxu0 0
        %1084 = vmatpush.bf16.msra.mxu0 0
        %1085 = vmatpush.bf16.msra.mxu0 0
        %1086 = vmatpush.bf16.msra.mxu0 0
        %1087 = vmatpush.bf16.msra.mxu0 0
        %1088 = vmatpush.bf16.msra.mxu0 0
        %1089 = vmatpush.bf16.msra.mxu0 %v1006
        %1090 = vmatpush.bf16.msra.mxu0 %v963
        %1091 = vmatmul.bf16.gmra.mxu0 %v991
        %v1092 = vpop.f32.mrf.mxu0
        %v1093 = vadd.f32 %v772, %v1092
        %v1094 = vpop.f32.mrf.mxu0
        %v1095 = vadd.f32 %v774, %v1094
        %1096 = vmatmul.bf16.gmra.mxu0 %v994
        %v1097 = vpop.f32.mrf.mxu0
        %v1098 = vadd.f32 %v777, %v1097
        %v1099 = vpop.f32.mrf.mxu0
        %v1100 = vadd.f32 %v779, %v1099
        %1101 = vdwg.mxu0
        %1102 = vmatpush.bf16.msra.mxu0 0
        %1103 = vmatpush.bf16.msra.mxu0 0
        %1104 = vmatpush.bf16.msra.mxu0 0
        %1105 = vmatpush.bf16.msra.mxu0 0
        %1106 = vmatpush.bf16.msra.mxu0 0
        %1107 = vmatpush.bf16.msra.mxu0 0
        %1108 = vmatpush.bf16.msra.mxu0 %v1009
        %1109 = vmatpush.bf16.msra.mxu0 %v964
        %1110 = vmatmul.bf16.gmra.mxu0 %v991
        %v1111 = vpop.f32.mrf.mxu0
        %v1112 = vadd.f32 %v791, %v1111
        %v1113 = vpop.f32.mrf.mxu0
        %v1114 = vadd.f32 %v793, %v1113
        %1115 = vmatmul.bf16.gmra.mxu0 %v994
        %v1116 = vpop.f32.mrf.mxu0
        %v1117 = vadd.f32 %v796, %v1116
        %v1118 = vpop.f32.mrf.mxu0
        %v1119 = vadd.f32 %v798, %v1118
        %1120 = vdwg.mxu0
        %1121 = vmatpush.bf16.msra.mxu0 0
        %1122 = vmatpush.bf16.msra.mxu0 0
        %1123 = vmatpush.bf16.msra.mxu0 0
        %1124 = vmatpush.bf16.msra.mxu0 0
        %1125 = vmatpush.bf16.msra.mxu0 0
        %1126 = vmatpush.bf16.msra.mxu0 0
        %1127 = vmatpush.bf16.msra.mxu0 %v1012
        %1128 = vmatpush.bf16.msra.mxu0 %v965
        %1129 = vmatmul.bf16.gmra.mxu0 %v991
        %v1130 = vpop.f32.mrf.mxu0
        %v1131 = vadd.f32 %v810, %v1130
        %v1132 = vpop.f32.mrf.mxu0
        %v1133 = vadd.f32 %v812, %v1132
        %1134 = vmatmul.bf16.gmra.mxu0 %v994
        %v1135 = vpop.f32.mrf.mxu0
        %v1136 = vadd.f32 %v815, %v1135
        %v1137 = vpop.f32.mrf.mxu0
        %v1138 = vadd.f32 %v817, %v1137
        %1139 = vdwg.mxu0
        %1140 = vmatpush.bf16.msra.mxu0 0
        %1141 = vmatpush.bf16.msra.mxu0 0
        %1142 = vmatpush.bf16.msra.mxu0 0
        %1143 = vmatpush.bf16.msra.mxu0 0
        %1144 = vmatpush.bf16.msra.mxu0 0
        %1145 = vmatpush.bf16.msra.mxu0 0
        %1146 = vmatpush.bf16.msra.mxu0 %v1015
        %1147 = vmatpush.bf16.msra.mxu0 %v966
        %1148 = vmatmul.bf16.gmra.mxu0 %v991
        %v1149 = vpop.f32.mrf.mxu0
        %v1150 = vadd.f32 %v829, %v1149
        %v1151 = vpop.f32.mrf.mxu0
        %v1152 = vadd.f32 %v831, %v1151
        %1153 = vmatmul.bf16.gmra.mxu0 %v994
        %v1154 = vpop.f32.mrf.mxu0
        %v1155 = vadd.f32 %v834, %v1154
        %v1156 = vpop.f32.mrf.mxu0
        %v1157 = vadd.f32 %v836, %v1156
        %1158 = vdwg.mxu0
        %1159 = vmatpush.bf16.msra.mxu0 0
        %1160 = vmatpush.bf16.msra.mxu0 0
        %1161 = vmatpush.bf16.msra.mxu0 0
        %1162 = vmatpush.bf16.msra.mxu0 0
        %1163 = vmatpush.bf16.msra.mxu0 0
        %1164 = vmatpush.bf16.msra.mxu0 0
        %1165 = vmatpush.bf16.msra.mxu0 %v1018
        %1166 = vmatpush.bf16.msra.mxu0 %v967
        %1167 = vmatmul.bf16.gmra.mxu0 %v991
        %v1168 = vpop.f32.mrf.mxu0
        %v1169 = vadd.f32 %v848, %v1168
        %v1170 = vpop.f32.mrf.mxu0
        %v1171 = vadd.f32 %v850, %v1170
        %1172 = vmatmul.bf16.gmra.mxu0 %v994
        %v1173 = vpop.f32.mrf.mxu0
        %v1174 = vadd.f32 %v853, %v1173
        %v1175 = vpop.f32.mrf.mxu0
        %v1176 = vadd.f32 %v855, %v1175
        %1177 = vdwg.mxu0
        %1178 = vmatpush.bf16.msra.mxu0 0
        %1179 = vmatpush.bf16.msra.mxu0 0
        %1180 = vmatpush.bf16.msra.mxu0 0
        %1181 = vmatpush.bf16.msra.mxu0 0
        %1182 = vmatpush.bf16.msra.mxu0 0
        %1183 = vmatpush.bf16.msra.mxu0 0
        %1184 = vmatpush.bf16.msra.mxu0 %v1021
        %1185 = vmatpush.bf16.msra.mxu0 %v968
        %1186 = vmatmul.bf16.gmra.mxu0 %v991
        %v1187 = vpop.f32.mrf.mxu0
        %v1188 = vadd.f32 %v867, %v1187
        %v1189 = vpop.f32.mrf.mxu0
        %v1190 = vadd.f32 %v869, %v1189
        %1191 = vmatmul.bf16.gmra.mxu0 %v994
        %v1192 = vpop.f32.mrf.mxu0
        %v1193 = vadd.f32 %v872, %v1192
        %v1194 = vpop.f32.mrf.mxu0
        %v1195 = vadd.f32 %v874, %v1194
        %1196 = vdwg.mxu0
        %1197 = vmatpush.bf16.msra.mxu0 0
        %1198 = vmatpush.bf16.msra.mxu0 0
        %1199 = vmatpush.bf16.msra.mxu0 0
        %1200 = vmatpush.bf16.msra.mxu0 0
        %1201 = vmatpush.bf16.msra.mxu0 0
        %1202 = vmatpush.bf16.msra.mxu0 0
        %1203 = vmatpush.bf16.msra.mxu0 %v1024
        %1204 = vmatpush.bf16.msra.mxu0 %v969
        %1205 = vmatmul.bf16.gmra.mxu0 %v991
        %v1206 = vpop.f32.mrf.mxu0
        %v1207 = vadd.f32 %v886, %v1206
        %v1208 = vpop.f32.mrf.mxu0
        %v1209 = vadd.f32 %v888, %v1208
        %1210 = vmatmul.bf16.gmra.mxu0 %v994
        %v1211 = vpop.f32.mrf.mxu0
        %v1212 = vadd.f32 %v891, %v1211
        %v1213 = vpop.f32.mrf.mxu0
        %v1214 = vadd.f32 %v893, %v1213
        %1215 = vdwg.mxu0
        %v1216 = vunpack.c.h.b16 %v456
        %v1217 = vpack.c.b16 %v1216, %v1216
        %1218 = vrot.lane.b32.xlu0 %v623, 126
        %v1219 = vpop.permute.xlu0 %1218
        %1220 = vrot.lane.b32.xlu0 %v1217, 126
        %v1221 = vpop.permute.xlu0 %1220
        %v1222 = vsel %vm539, %v538, %v1219
        %v1223 = vsel %vm539, %v1219, %v1221
        %v1225 = vsel %vm550, %v476, %v490
        %v1226 = vsel %vm550, %v484, %v628
        %v1227 = vsel %vm550, %v516, %v629
        %v1230 = vsel %vm550, %v623, %v627
        %s1231 = scalar_lea.vmem %s5, 32
        %v1232 = vld [vmem:[%s1231] sm:$0xf]
        %v1233 = vld [vmem:[%s1231 + $0x4] sm:$0xf]
        %v1234 = vld [vmem:[%s1231 + $0x8] sm:$0xf]
        %v1235 = vld [vmem:[%s1231 + $0xc] sm:$0xf]
        %v1240 = vunpack.c.l.b16 %v1232
        %v1241 = vunpack.c.l.b16 %v1233
        %v1242 = vunpack.c.l.b16 %v1234
        %v1243 = vunpack.c.l.b16 %v1235
        %v1244 = vpack.c.b16 %v1241, %v1240
        %v1245 = vpack.c.b16 %v1243, %v1242
        %1250 = vrot.lane.b32.xlu0 %v1225, 1
        %v1251 = vpop.permute.xlu0 %1250
        %1252 = vrot.lane.b32.xlu0 %v1226, 1
        %v1253 = vpop.permute.xlu0 %1252
        %1254 = vrot.lane.b32.xlu0 %v1227, 1
        %v1255 = vpop.permute.xlu0 %1254
        %1256 = vrot.lane.b32.xlu0 %v1230, 1
        %v1257 = vpop.permute.xlu0 %1256
        %1258 = vrot.lane.b32.xlu0 %v522, 1
        %v1259 = vpop.permute.xlu0 %1258
        %1260 = vrot.lane.b32.xlu0 %v1222, 1
        %v1261 = vpop.permute.xlu0 %1260
        %1262 = vrot.lane.b32.xlu0 %v1223, 1
        %v1263 = vpop.permute.xlu0 %1262
        %v1264 = vsel %vm610, %v1251, %v923
        %v1265 = vsel %vm610, %v935, %v1253
        %v1266 = vsel %vm610, %v1253, %v1255
        %v1267 = vsel %vm610, %v1255, %v1257
        %v1268 = vsel %vm610, %v1259, %v945
        %v1269 = vsel %vm610, %v959, %v1261
        %v1270 = vsel %vm610, %v1261, %v1263
        %v1276 = vsel %vm676, %v1244, 0
        %v1279 = vsel %vm676, %v1245, 0
        %v1282 = vsel %vm550, %v1268, 0
        %v1285 = vsel %vm550, %v1269, 0
        %v1288 = vsel %vm550, %v1270, 0
        %1290 = vmatpush.bf16.msra.mxu0 0
        %1291 = vmatpush.bf16.msra.mxu0 0
        %1292 = vmatpush.bf16.msra.mxu0 0
        %1293 = vmatpush.bf16.msra.mxu0 0
        %1294 = vmatpush.bf16.msra.mxu0 0
        %1295 = vmatpush.bf16.msra.mxu0 0
        %1296 = vmatpush.bf16.msra.mxu0 %v1282
        %1297 = vmatpush.bf16.msra.mxu0 %v1264
        %1298 = vmatmul.bf16.gmra.mxu0 %v1276
        %v1299 = vpop.f32.mrf.mxu0
        %v1300 = vadd.f32 0.0, %v1299
        %v1301 = vpop.f32.mrf.mxu0
        %v1302 = vadd.f32 0.0, %v1301
        %1303 = vmatmul.bf16.gmra.mxu0 %v1279
        %v1304 = vpop.f32.mrf.mxu0
        %v1305 = vadd.f32 0.0, %v1304
        %v1306 = vpop.f32.mrf.mxu0
        %v1307 = vadd.f32 0.0, %v1306
        %1308 = vdwg.mxu0
        %1309 = vmatpush.bf16.msra.mxu0 0
        %1310 = vmatpush.bf16.msra.mxu0 0
        %1311 = vmatpush.bf16.msra.mxu0 0
        %1312 = vmatpush.bf16.msra.mxu0 0
        %1313 = vmatpush.bf16.msra.mxu0 0
        %1314 = vmatpush.bf16.msra.mxu0 0
        %1315 = vmatpush.bf16.msra.mxu0 %v1006
        %1316 = vmatpush.bf16.msra.mxu0 %v963
        %1317 = vmatmul.bf16.gmra.mxu0 %v1276
        %v1318 = vpop.f32.mrf.mxu0
        %v1319 = vadd.f32 0.0, %v1318
        %v1320 = vpop.f32.mrf.mxu0
        %v1321 = vadd.f32 0.0, %v1320
        %1322 = vmatmul.bf16.gmra.mxu0 %v1279
        %v1323 = vpop.f32.mrf.mxu0
        %v1324 = vadd.f32 0.0, %v1323
        %v1325 = vpop.f32.mrf.mxu0
        %v1326 = vadd.f32 0.0, %v1325
        %1327 = vdwg.mxu0
        %1328 = vmatpush.bf16.msra.mxu0 0
        %1329 = vmatpush.bf16.msra.mxu0 0
        %1330 = vmatpush.bf16.msra.mxu0 0
        %1331 = vmatpush.bf16.msra.mxu0 0
        %1332 = vmatpush.bf16.msra.mxu0 0
        %1333 = vmatpush.bf16.msra.mxu0 0
        %1334 = vmatpush.bf16.msra.mxu0 %v1009
        %1335 = vmatpush.bf16.msra.mxu0 %v964
        %1336 = vmatmul.bf16.gmra.mxu0 %v1276
        %v1337 = vpop.f32.mrf.mxu0
        %v1338 = vadd.f32 0.0, %v1337
        %v1339 = vpop.f32.mrf.mxu0
        %v1340 = vadd.f32 0.0, %v1339
        %1341 = vmatmul.bf16.gmra.mxu0 %v1279
        %v1342 = vpop.f32.mrf.mxu0
        %v1343 = vadd.f32 0.0, %v1342
        %v1344 = vpop.f32.mrf.mxu0
        %v1345 = vadd.f32 0.0, %v1344
        %1346 = vdwg.mxu0
        %1347 = vmatpush.bf16.msra.mxu0 0
        %1348 = vmatpush.bf16.msra.mxu0 0
        %1349 = vmatpush.bf16.msra.mxu0 0
        %1350 = vmatpush.bf16.msra.mxu0 0
        %1351 = vmatpush.bf16.msra.mxu0 0
        %1352 = vmatpush.bf16.msra.mxu0 0
        %1353 = vmatpush.bf16.msra.mxu0 %v1012
        %1354 = vmatpush.bf16.msra.mxu0 %v965
        %1355 = vmatmul.bf16.gmra.mxu0 %v1276
        %v1356 = vpop.f32.mrf.mxu0
        %v1357 = vadd.f32 0.0, %v1356
        %v1358 = vpop.f32.mrf.mxu0
        %v1359 = vadd.f32 0.0, %v1358
        %1360 = vmatmul.bf16.gmra.mxu0 %v1279
        %v1361 = vpop.f32.mrf.mxu0
        %v1362 = vadd.f32 0.0, %v1361
        %v1363 = vpop.f32.mrf.mxu0
        %v1364 = vadd.f32 0.0, %v1363
        %1365 = vdwg.mxu0
        %1366 = vmatpush.bf16.msra.mxu0 0
        %1367 = vmatpush.bf16.msra.mxu0 0
        %1368 = vmatpush.bf16.msra.mxu0 0
        %1369 = vmatpush.bf16.msra.mxu0 0
        %1370 = vmatpush.bf16.msra.mxu0 0
        %1371 = vmatpush.bf16.msra.mxu0 0
        %1372 = vmatpush.bf16.msra.mxu0 %v1015
        %1373 = vmatpush.bf16.msra.mxu0 %v966
        %1374 = vmatmul.bf16.gmra.mxu0 %v1276
        %v1375 = vpop.f32.mrf.mxu0
        %v1376 = vadd.f32 0.0, %v1375
        %v1377 = vpop.f32.mrf.mxu0
        %v1378 = vadd.f32 0.0, %v1377
        %1379 = vmatmul.bf16.gmra.mxu0 %v1279
        %v1380 = vpop.f32.mrf.mxu0
        %v1381 = vadd.f32 0.0, %v1380
        %v1382 = vpop.f32.mrf.mxu0
        %v1383 = vadd.f32 0.0, %v1382
        %1384 = vdwg.mxu0
        %1385 = vmatpush.bf16.msra.mxu0 0
        %1386 = vmatpush.bf16.msra.mxu0 0
        %1387 = vmatpush.bf16.msra.mxu0 0
        %1388 = vmatpush.bf16.msra.mxu0 0
        %1389 = vmatpush.bf16.msra.mxu0 0
        %1390 = vmatpush.bf16.msra.mxu0 0
        %1391 = vmatpush.bf16.msra.mxu0 %v1018
        %1392 = vmatpush.bf16.msra.mxu0 %v967
        %1393 = vmatmul.bf16.gmra.mxu0 %v1276
        %v1394 = vpop.f32.mrf.mxu0
        %v1395 = vadd.f32 0.0, %v1394
        %v1396 = vpop.f32.mrf.mxu0
        %v1397 = vadd.f32 0.0, %v1396
        %1398 = vmatmul.bf16.gmra.mxu0 %v1279
        %v1399 = vpop.f32.mrf.mxu0
        %v1400 = vadd.f32 0.0, %v1399
        %v1401 = vpop.f32.mrf.mxu0
        %v1402 = vadd.f32 0.0, %v1401
        %1403 = vdwg.mxu0
        %1404 = vmatpush.bf16.msra.mxu0 0
        %1405 = vmatpush.bf16.msra.mxu0 0
        %1406 = vmatpush.bf16.msra.mxu0 0
        %1407 = vmatpush.bf16.msra.mxu0 0
        %1408 = vmatpush.bf16.msra.mxu0 0
        %1409 = vmatpush.bf16.msra.mxu0 0
        %1410 = vmatpush.bf16.msra.mxu0 %v1021
        %1411 = vmatpush.bf16.msra.mxu0 %v968
        %1412 = vmatmul.bf16.gmra.mxu0 %v1276
        %v1413 = vpop.f32.mrf.mxu0
        %v1414 = vadd.f32 0.0, %v1413
        %v1415 = vpop.f32.mrf.mxu0
        %v1416 = vadd.f32 0.0, %v1415
        %1417 = vmatmul.bf16.gmra.mxu0 %v1279
        %v1418 = vpop.f32.mrf.mxu0
        %v1419 = vadd.f32 0.0, %v1418
        %v1420 = vpop.f32.mrf.mxu0
        %v1421 = vadd.f32 0.0, %v1420
        %1422 = vdwg.mxu0
        %1423 = vmatpush.bf16.msra.mxu0 0
        %1424 = vmatpush.bf16.msra.mxu0 0
        %1425 = vmatpush.bf16.msra.mxu0 0
        %1426 = vmatpush.bf16.msra.mxu0 0
        %1427 = vmatpush.bf16.msra.mxu0 0
        %1428 = vmatpush.bf16.msra.mxu0 0
        %1429 = vmatpush.bf16.msra.mxu0 %v1024
        %1430 = vmatpush.bf16.msra.mxu0 %v1265
        %1431 = vmatmul.bf16.gmra.mxu0 %v1276
        %v1432 = vpop.f32.mrf.mxu0
        %v1433 = vadd.f32 0.0, %v1432
        %v1434 = vpop.f32.mrf.mxu0
        %v1435 = vadd.f32 0.0, %v1434
        %1436 = vmatmul.bf16.gmra.mxu0 %v1279
        %v1437 = vpop.f32.mrf.mxu0
        %v1438 = vadd.f32 0.0, %v1437
        %v1439 = vpop.f32.mrf.mxu0
        %v1440 = vadd.f32 0.0, %v1439
        %1441 = vdwg.mxu0
        %1442 = vmatpush.bf16.msra.mxu0 0
        %1443 = vmatpush.bf16.msra.mxu0 0
        %1444 = vmatpush.bf16.msra.mxu0 0
        %1445 = vmatpush.bf16.msra.mxu0 0
        %1446 = vmatpush.bf16.msra.mxu0 0
        %1447 = vmatpush.bf16.msra.mxu0 0
        %1448 = vmatpush.bf16.msra.mxu0 %v1285
        %1449 = vmatpush.bf16.msra.mxu0 %v1266
        %1450 = vmatmul.bf16.gmra.mxu0 %v1276
        %v1451 = vpop.f32.mrf.mxu0
        %v1452 = vadd.f32 0.0, %v1451
        %v1453 = vpop.f32.mrf.mxu0
        %v1454 = vadd.f32 0.0, %v1453
        %1455 = vmatmul.bf16.gmra.mxu0 %v1279
        %v1456 = vpop.f32.mrf.mxu0
        %v1457 = vadd.f32 0.0, %v1456
        %v1458 = vpop.f32.mrf.mxu0
        %v1459 = vadd.f32 0.0, %v1458
        %1460 = vdwg.mxu0
        %1461 = vmatpush.bf16.msra.mxu0 0
        %1462 = vmatpush.bf16.msra.mxu0 0
        %1463 = vmatpush.bf16.msra.mxu0 0
        %1464 = vmatpush.bf16.msra.mxu0 0
        %1465 = vmatpush.bf16.msra.mxu0 0
        %1466 = vmatpush.bf16.msra.mxu0 0
        %1467 = vmatpush.bf16.msra.mxu0 %v1288
        %1468 = vmatpush.bf16.msra.mxu0 %v1267
        %1469 = vmatmul.bf16.gmra.mxu0 %v1276
        %v1470 = vpop.f32.mrf.mxu0
        %v1471 = vadd.f32 0.0, %v1470
        %v1472 = vpop.f32.mrf.mxu0
        %v1473 = vadd.f32 0.0, %v1472
        %1474 = vmatmul.bf16.gmra.mxu0 %v1279
        %v1475 = vpop.f32.mrf.mxu0
        %v1476 = vadd.f32 0.0, %v1475
        %v1477 = vpop.f32.mrf.mxu0
        %v1478 = vadd.f32 0.0, %v1477
        %1479 = vdwg.mxu0
        %v1480 = vadd.f32 %v1036, %v1300
        %v1481 = vadd.f32 %v1055, %v1319
        %v1482 = vadd.f32 %v1074, %v1338
        %v1483 = vadd.f32 %v1093, %v1357
        %v1484 = vadd.f32 %v1112, %v1376
        %v1485 = vadd.f32 %v1131, %v1395
        %v1486 = vadd.f32 %v1150, %v1414
        %v1487 = vadd.f32 %v1169, %v1433
        %v1488 = vadd.f32 %v1188, %v1452
        %v1489 = vadd.f32 %v1207, %v1471
        %v1490 = vadd.f32 %v1038, %v1302
        %v1491 = vadd.f32 %v1057, %v1321
        %v1492 = vadd.f32 %v1076, %v1340
        %v1493 = vadd.f32 %v1095, %v1359
        %v1494 = vadd.f32 %v1114, %v1378
        %v1495 = vadd.f32 %v1133, %v1397
        %v1496 = vadd.f32 %v1152, %v1416
        %v1497 = vadd.f32 %v1171, %v1435
        %v1498 = vadd.f32 %v1190, %v1454
        %v1499 = vadd.f32 %v1209, %v1473
        %v1500 = vadd.f32 %v1041, %v1305
        %v1501 = vadd.f32 %v1060, %v1324
        %v1502 = vadd.f32 %v1079, %v1343
        %v1503 = vadd.f32 %v1098, %v1362
        %v1504 = vadd.f32 %v1117, %v1381
        %v1505 = vadd.f32 %v1136, %v1400
        %v1506 = vadd.f32 %v1155, %v1419
        %v1507 = vadd.f32 %v1174, %v1438
        %v1508 = vadd.f32 %v1193, %v1457
        %v1509 = vadd.f32 %v1212, %v1476
        %v1510 = vadd.f32 %v1043, %v1307
        %v1511 = vadd.f32 %v1062, %v1326
        %v1512 = vadd.f32 %v1081, %v1345
        %v1513 = vadd.f32 %v1100, %v1364
        %v1514 = vadd.f32 %v1119, %v1383
        %v1515 = vadd.f32 %v1138, %v1402
        %v1516 = vadd.f32 %v1157, %v1421
        %v1517 = vadd.f32 %v1176, %v1440
        %v1518 = vadd.f32 %v1195, %v1459
        %v1519 = vadd.f32 %v1214, %v1478
        %v1520 = vld [vmem:[%s6] sm:$0xff]
        %v1521 = vld [vmem:[%s6 + $0x8] sm:$0xff]
        %v1522 = vld [vmem:[%s6 + $0x10] sm:$0xff]
        %v1523 = vld [vmem:[%s6 + $0x18] sm:$0xff]
        %1525 = vset.pattern.permute.xlu0 0
        %1526 = vperm.xlu0 %1525, %v1520
        %v1527 = vpop.permute.xlu0 %1526
        %1530 = vset.pattern.permute.xlu0 0
        %1531 = vperm.xlu0 %1530, %v1521
        %v1532 = vpop.permute.xlu0 %1531
        %1535 = vset.pattern.permute.xlu0 0
        %1536 = vperm.xlu0 %1535, %v1522
        %v1537 = vpop.permute.xlu0 %1536
        %1540 = vset.pattern.permute.xlu0 0
        %1541 = vperm.xlu0 %1540, %v1523
        %v1542 = vpop.permute.xlu0 %1541
        %v1544 = vadd.f32 %v1480, %v1527
        %v1545 = vadd.f32 %v1481, %v1527
        %v1546 = vadd.f32 %v1482, %v1527
        %v1547 = vadd.f32 %v1483, %v1527
        %v1548 = vadd.f32 %v1484, %v1527
        %v1549 = vadd.f32 %v1485, %v1527
        %v1550 = vadd.f32 %v1486, %v1527
        %v1551 = vadd.f32 %v1487, %v1527
        %v1552 = vadd.f32 %v1488, %v1527
        %v1553 = vadd.f32 %v1489, %v1527
        %v1554 = vadd.f32 %v1490, %v1532
        %v1555 = vadd.f32 %v1491, %v1532
        %v1556 = vadd.f32 %v1492, %v1532
        %v1557 = vadd.f32 %v1493, %v1532
        %v1558 = vadd.f32 %v1494, %v1532
        %v1559 = vadd.f32 %v1495, %v1532
        %v1560 = vadd.f32 %v1496, %v1532
        %v1561 = vadd.f32 %v1497, %v1532
        %v1562 = vadd.f32 %v1498, %v1532
        %v1563 = vadd.f32 %v1499, %v1532
        %v1564 = vadd.f32 %v1500, %v1537
        %v1565 = vadd.f32 %v1501, %v1537
        %v1566 = vadd.f32 %v1502, %v1537
        %v1567 = vadd.f32 %v1503, %v1537
        %v1568 = vadd.f32 %v1504, %v1537
        %v1569 = vadd.f32 %v1505, %v1537
        %v1570 = vadd.f32 %v1506, %v1537
        %v1571 = vadd.f32 %v1507, %v1537
        %v1572 = vadd.f32 %v1508, %v1537
        %v1573 = vadd.f32 %v1509, %v1537
        %v1574 = vadd.f32 %v1510, %v1542
        %v1575 = vadd.f32 %v1511, %v1542
        %v1576 = vadd.f32 %v1512, %v1542
        %v1577 = vadd.f32 %v1513, %v1542
        %v1578 = vadd.f32 %v1514, %v1542
        %v1579 = vadd.f32 %v1515, %v1542
        %v1580 = vadd.f32 %v1516, %v1542
        %v1581 = vadd.f32 %v1517, %v1542
        %v1582 = vadd.f32 %v1518, %v1542
        %v1583 = vadd.f32 %v1519, %v1542
        %vm1584 = vcmp.ge.f32.partialorder %v1544, 0.0
        %vm1585 = vcmp.ge.f32.partialorder %v1545, 0.0
        %vm1586 = vcmp.ge.f32.partialorder %v1546, 0.0
        %vm1587 = vcmp.ge.f32.partialorder %v1547, 0.0
        %vm1588 = vcmp.ge.f32.partialorder %v1548, 0.0
        %vm1589 = vcmp.ge.f32.partialorder %v1549, 0.0
        %vm1590 = vcmp.ge.f32.partialorder %v1550, 0.0
        %vm1591 = vcmp.ge.f32.partialorder %v1551, 0.0
        %vm1592 = vcmp.ge.f32.partialorder %v1552, 0.0
        %vm1593 = vcmp.ge.f32.partialorder %v1553, 0.0
        %vm1594 = vcmp.ge.f32.partialorder %v1554, 0.0
        %vm1595 = vcmp.ge.f32.partialorder %v1555, 0.0
        %vm1596 = vcmp.ge.f32.partialorder %v1556, 0.0
        %vm1597 = vcmp.ge.f32.partialorder %v1557, 0.0
        %vm1598 = vcmp.ge.f32.partialorder %v1558, 0.0
        %vm1599 = vcmp.ge.f32.partialorder %v1559, 0.0
        %vm1600 = vcmp.ge.f32.partialorder %v1560, 0.0
        %vm1601 = vcmp.ge.f32.partialorder %v1561, 0.0
        %vm1602 = vcmp.ge.f32.partialorder %v1562, 0.0
        %vm1603 = vcmp.ge.f32.partialorder %v1563, 0.0
        %vm1604 = vcmp.ge.f32.partialorder %v1564, 0.0
        %vm1605 = vcmp.ge.f32.partialorder %v1565, 0.0
        %vm1606 = vcmp.ge.f32.partialorder %v1566, 0.0
        %vm1607 = vcmp.ge.f32.partialorder %v1567, 0.0
        %vm1608 = vcmp.ge.f32.partialorder %v1568, 0.0
        %vm1609 = vcmp.ge.f32.partialorder %v1569, 0.0
        %vm1610 = vcmp.ge.f32.partialorder %v1570, 0.0
        %vm1611 = vcmp.ge.f32.partialorder %v1571, 0.0
        %vm1612 = vcmp.ge.f32.partialorder %v1572, 0.0
        %vm1613 = vcmp.ge.f32.partialorder %v1573, 0.0
        %vm1614 = vcmp.ge.f32.partialorder %v1574, 0.0
        %vm1615 = vcmp.ge.f32.partialorder %v1575, 0.0
        %vm1616 = vcmp.ge.f32.partialorder %v1576, 0.0
        %vm1617 = vcmp.ge.f32.partialorder %v1577, 0.0
        %vm1618 = vcmp.ge.f32.partialorder %v1578, 0.0
        %vm1619 = vcmp.ge.f32.partialorder %v1579, 0.0
        %vm1620 = vcmp.ge.f32.partialorder %v1580, 0.0
        %vm1621 = vcmp.ge.f32.partialorder %v1581, 0.0
        %vm1622 = vcmp.ge.f32.partialorder %v1582, 0.0
        %vm1623 = vcmp.ge.f32.partialorder %v1583, 0.0
        %v1624 = vmul.f32 %v1544, 0.01
        %v1625 = vmul.f32 %v1545, 0.01
        %v1626 = vmul.f32 %v1546, 0.01
        %v1627 = vmul.f32 %v1547, 0.01
        %v1628 = vmul.f32 %v1548, 0.01
        %v1629 = vmul.f32 %v1549, 0.01
        %v1630 = vmul.f32 %v1550, 0.01
        %v1631 = vmul.f32 %v1551, 0.01
        %v1632 = vmul.f32 %v1552, 0.01
        %v1633 = vmul.f32 %v1553, 0.01
        %v1634 = vmul.f32 %v1554, 0.01
        %v1635 = vmul.f32 %v1555, 0.01
        %v1636 = vmul.f32 %v1556, 0.01
        %v1637 = vmul.f32 %v1557, 0.01
        %v1638 = vmul.f32 %v1558, 0.01
        %v1639 = vmul.f32 %v1559, 0.01
        %v1640 = vmul.f32 %v1560, 0.01
        %v1641 = vmul.f32 %v1561, 0.01
        %v1642 = vmul.f32 %v1562, 0.01
        %v1643 = vmul.f32 %v1563, 0.01
        %v1644 = vmul.f32 %v1564, 0.01
        %v1645 = vmul.f32 %v1565, 0.01
        %v1646 = vmul.f32 %v1566, 0.01
        %v1647 = vmul.f32 %v1567, 0.01
        %v1648 = vmul.f32 %v1568, 0.01
        %v1649 = vmul.f32 %v1569, 0.01
        %v1650 = vmul.f32 %v1570, 0.01
        %v1651 = vmul.f32 %v1571, 0.01
        %v1652 = vmul.f32 %v1572, 0.01
        %v1653 = vmul.f32 %v1573, 0.01
        %v1654 = vmul.f32 %v1574, 0.01
        %v1655 = vmul.f32 %v1575, 0.01
        %v1656 = vmul.f32 %v1576, 0.01
        %v1657 = vmul.f32 %v1577, 0.01
        %v1658 = vmul.f32 %v1578, 0.01
        %v1659 = vmul.f32 %v1579, 0.01
        %v1660 = vmul.f32 %v1580, 0.01
        %v1661 = vmul.f32 %v1581, 0.01
        %v1662 = vmul.f32 %v1582, 0.01
        %v1663 = vmul.f32 %v1583, 0.01
        %v1664 = vsel %vm1584, %v1544, %v1624
        %v1665 = vsel %vm1585, %v1545, %v1625
        %v1666 = vsel %vm1586, %v1546, %v1626
        %v1667 = vsel %vm1587, %v1547, %v1627
        %v1668 = vsel %vm1588, %v1548, %v1628
        %v1669 = vsel %vm1589, %v1549, %v1629
        %v1670 = vsel %vm1590, %v1550, %v1630
        %v1671 = vsel %vm1591, %v1551, %v1631
        %v1672 = vsel %vm1592, %v1552, %v1632
        %v1673 = vsel %vm1593, %v1553, %v1633
        %v1674 = vsel %vm1594, %v1554, %v1634
        %v1675 = vsel %vm1595, %v1555, %v1635
        %v1676 = vsel %vm1596, %v1556, %v1636
        %v1677 = vsel %vm1597, %v1557, %v1637
        %v1678 = vsel %vm1598, %v1558, %v1638
        %v1679 = vsel %vm1599, %v1559, %v1639
        %v1680 = vsel %vm1600, %v1560, %v1640
        %v1681 = vsel %vm1601, %v1561, %v1641
        %v1682 = vsel %vm1602, %v1562, %v1642
        %v1683 = vsel %vm1603, %v1563, %v1643
        %v1684 = vsel %vm1604, %v1564, %v1644
        %v1685 = vsel %vm1605, %v1565, %v1645
        %v1686 = vsel %vm1606, %v1566, %v1646
        %v1687 = vsel %vm1607, %v1567, %v1647
        %v1688 = vsel %vm1608, %v1568, %v1648
        %v1689 = vsel %vm1609, %v1569, %v1649
        %v1690 = vsel %vm1610, %v1570, %v1650
        %v1691 = vsel %vm1611, %v1571, %v1651
        %v1692 = vsel %vm1612, %v1572, %v1652
        %v1693 = vsel %vm1613, %v1573, %v1653
        %v1694 = vsel %vm1614, %v1574, %v1654
        %v1695 = vsel %vm1615, %v1575, %v1655
        %v1696 = vsel %vm1616, %v1576, %v1656
        %v1697 = vsel %vm1617, %v1577, %v1657
        %v1698 = vsel %vm1618, %v1578, %v1658
        %v1699 = vsel %vm1619, %v1579, %v1659
        %v1700 = vsel %vm1620, %v1580, %v1660
        %v1701 = vsel %vm1621, %v1581, %v1661
        %v1702 = vsel %vm1622, %v1582, %v1662
        %v1703 = vsel %vm1623, %v1583, %v1663
        %v1704 = vld [vmem:[%s2] sm:$0xff]
        %v1705 = vld [vmem:[%s2 + $0x8] sm:$0x3]
        %v1708 = vperm.slane %v1704, 0
        %v1709 = vperm.slane %v1704, 1
        %v1710 = vperm.slane %v1704, 2
        %v1711 = vperm.slane %v1704, 3
        %v1712 = vperm.slane %v1704, 4
        %v1713 = vperm.slane %v1704, 5
        %v1714 = vperm.slane %v1704, 6
        %v1715 = vperm.slane %v1704, 7
        %v1716 = vperm.slane %v1705, 0
        %v1717 = vperm.slane %v1705, 1
        %v1728 = vmul.f32 %v1664, %v1708
        %v1729 = vmul.f32 %v1665, %v1709
        %v1730 = vmul.f32 %v1666, %v1710
        %v1731 = vmul.f32 %v1667, %v1711
        %v1732 = vmul.f32 %v1668, %v1712
        %v1733 = vmul.f32 %v1669, %v1713
        %v1734 = vmul.f32 %v1670, %v1714
        %v1735 = vmul.f32 %v1671, %v1715
        %v1736 = vmul.f32 %v1672, %v1716
        %v1737 = vmul.f32 %v1673, %v1717
        %v1738 = vmul.f32 %v1674, %v1708
        %v1739 = vmul.f32 %v1675, %v1709
        %v1740 = vmul.f32 %v1676, %v1710
        %v1741 = vmul.f32 %v1677, %v1711
        %v1742 = vmul.f32 %v1678, %v1712
        %v1743 = vmul.f32 %v1679, %v1713
        %v1744 = vmul.f32 %v1680, %v1714
        %v1745 = vmul.f32 %v1681, %v1715
        %v1746 = vmul.f32 %v1682, %v1716
        %v1747 = vmul.f32 %v1683, %v1717
        %v1748 = vmul.f32 %v1684, %v1708
        %v1749 = vmul.f32 %v1685, %v1709
        %v1750 = vmul.f32 %v1686, %v1710
        %v1751 = vmul.f32 %v1687, %v1711
        %v1752 = vmul.f32 %v1688, %v1712
        %v1753 = vmul.f32 %v1689, %v1713
        %v1754 = vmul.f32 %v1690, %v1714
        %v1755 = vmul.f32 %v1691, %v1715
        %v1756 = vmul.f32 %v1692, %v1716
        %v1757 = vmul.f32 %v1693, %v1717
        %v1758 = vmul.f32 %v1694, %v1708
        %v1759 = vmul.f32 %v1695, %v1709
        %v1760 = vmul.f32 %v1696, %v1710
        %v1761 = vmul.f32 %v1697, %v1711
        %v1762 = vmul.f32 %v1698, %v1712
        %v1763 = vmul.f32 %v1699, %v1713
        %v1764 = vmul.f32 %v1700, %v1714
        %v1765 = vmul.f32 %v1701, %v1715
        %v1766 = vmul.f32 %v1702, %v1716
        %v1767 = vmul.f32 %v1703, %v1717
        %1768 = vst [vmem:[#allocation2] sm:$0xf] 0
        %1769 = vst [vmem:[#allocation2 + $0x30] sm:$0xf] 0
        %1770 = vst [vmem:[#allocation2 + $0x60] sm:$0xf] 0
        %1771 = vst [vmem:[#allocation2 + $0x90] sm:$0xf] 0
        %1772 = vst [vmem:[#allocation2 + $0x2c] sm:$0xf] 0
        %1773 = vst [vmem:[#allocation2 + $0x5c] sm:$0xf] 0
        %1774 = vst [vmem:[#allocation2 + $0x8c] sm:$0xf] 0
        %1775 = vst [vmem:[#allocation2 + $0xbc] sm:$0xf] 0
        %v1776 = vpack.c.bf16 %v1729, %v1728
        %v1777 = vpack.c.bf16 %v1731, %v1730
        %v1778 = vpack.c.bf16 %v1733, %v1732
        %v1779 = vpack.c.bf16 %v1735, %v1734
        %v1780 = vpack.c.bf16 %v1737, %v1736
        %v1781 = vpack.c.bf16 %v1739, %v1738
        %v1782 = vpack.c.bf16 %v1741, %v1740
        %v1783 = vpack.c.bf16 %v1743, %v1742
        %v1784 = vpack.c.bf16 %v1745, %v1744
        %v1785 = vpack.c.bf16 %v1747, %v1746
        %v1786 = vpack.c.bf16 %v1749, %v1748
        %v1787 = vpack.c.bf16 %v1751, %v1750
        %v1788 = vpack.c.bf16 %v1753, %v1752
        %v1789 = vpack.c.bf16 %v1755, %v1754
        %v1790 = vpack.c.bf16 %v1757, %v1756
        %v1791 = vpack.c.bf16 %v1759, %v1758
        %v1792 = vpack.c.bf16 %v1761, %v1760
        %v1793 = vpack.c.bf16 %v1763, %v1762
        %v1794 = vpack.c.bf16 %v1765, %v1764
        %v1795 = vpack.c.bf16 %v1767, %v1766
        %1796 = vst [vmem:[#allocation2 + $0x4] sm:$0xff] %v1776
        %1797 = vst [vmem:[#allocation2 + $0xc] sm:$0xff] %v1777
        %1798 = vst [vmem:[#allocation2 + $0x14] sm:$0xff] %v1778
        %1799 = vst [vmem:[#allocation2 + $0x1c] sm:$0xff] %v1779
        %1800 = vst [vmem:[#allocation2 + $0x24] sm:$0xff] %v1780
        %1801 = vst [vmem:[#allocation2 + $0x34] sm:$0xff] %v1781
        %1802 = vst [vmem:[#allocation2 + $0x3c] sm:$0xff] %v1782
        %1803 = vst [vmem:[#allocation2 + $0x44] sm:$0xff] %v1783
        %1804 = vst [vmem:[#allocation2 + $0x4c] sm:$0xff] %v1784
        %1805 = vst [vmem:[#allocation2 + $0x54] sm:$0xff] %v1785
        %1806 = vst [vmem:[#allocation2 + $0x64] sm:$0xff] %v1786
        %1807 = vst [vmem:[#allocation2 + $0x6c] sm:$0xff] %v1787
        %1808 = vst [vmem:[#allocation2 + $0x74] sm:$0xff] %v1788
        %1809 = vst [vmem:[#allocation2 + $0x7c] sm:$0xff] %v1789
        %1810 = vst [vmem:[#allocation2 + $0x84] sm:$0xff] %v1790
        %1811 = vst [vmem:[#allocation2 + $0x94] sm:$0xff] %v1791
        %1812 = vst [vmem:[#allocation2 + $0x9c] sm:$0xff] %v1792
        %1813 = vst [vmem:[#allocation2 + $0xa4] sm:$0xff] %v1793
        %1814 = vst [vmem:[#allocation2 + $0xac] sm:$0xff] %v1794
        %1815 = vst [vmem:[#allocation2 + $0xb4] sm:$0xff] %v1795
        %p1816 = scmp.eq.s32.totalorder %s34, 0
        // Predicated region
        $region65: #{tpu_custom_call.1} parent=55 // pred_check
          %p1817 = pneg %p1816
        $region66: #{tpu_custom_call.1} parent=55 // pred_check_branch
          %1819 = sbr.rel (%p1817) target = $region68
        $region67: #{tpu_custom_call.1} parent=55 // pred_region
          %1820 = vst [vmem:[#allocation2 + $0x4] sm:$0xf] 0
          %1821 = vst [vmem:[#allocation2 + $0x34] sm:$0xf] 0
          %1822 = vst [vmem:[#allocation2 + $0x64] sm:$0xf] 0
          %1823 = vst [vmem:[#allocation2 + $0x94] sm:$0xf] 0
        $region68: #{tpu_custom_call.1} parent=55 // pred_fallthru
          _
        %p1824 = scmp.eq.s32.totalorder %s34, 1
        // Predicated region
        $region69: #{tpu_custom_call.1} parent=55 // pred_check
          %p1825 = pneg %p1824
        $region70: #{tpu_custom_call.1} parent=55 // pred_check_branch
          %1827 = sbr.rel (%p1825) target = $region72
        $region71: #{tpu_custom_call.1} parent=55 // pred_region
          %1828 = vst [vmem:[#allocation2 + $0x28] sm:$0xf] 0
          %1829 = vst [vmem:[#allocation2 + $0x58] sm:$0xf] 0
          %1830 = vst [vmem:[#allocation2 + $0x88] sm:$0xf] 0
          %1831 = vst [vmem:[#allocation2 + $0xb8] sm:$0xf] 0
        $region72: #{tpu_custom_call.1} parent=55 // pred_fallthru
          _
        %v1832 = vld [vmem:[#allocation2] sm:$0xff]
        %v1833 = vld [vmem:[#allocation2 + $0x8] sm:$0xff]
        %v1834 = vld [vmem:[#allocation2 + $0x10] sm:$0xff]
        %v1835 = vld [vmem:[#allocation2 + $0x18] sm:$0xff]
        %v1836 = vld [vmem:[#allocation2 + $0x20] sm:$0xff]
        %v1837 = vld [vmem:[#allocation2 + $0x28] sm:$0xff]
        %v1838 = vld [vmem:[#allocation2 + $0x30] sm:$0xff]
        %v1839 = vld [vmem:[#allocation2 + $0x38] sm:$0xff]
        %v1840 = vld [vmem:[#allocation2 + $0x40] sm:$0xff]
        %v1841 = vld [vmem:[#allocation2 + $0x48] sm:$0xff]
        %v1842 = vld [vmem:[#allocation2 + $0x50] sm:$0xff]
        %v1843 = vld [vmem:[#allocation2 + $0x58] sm:$0xff]
        %v1844 = vld [vmem:[#allocation2 + $0x60] sm:$0xff]
        %v1845 = vld [vmem:[#allocation2 + $0x68] sm:$0xff]
        %v1846 = vld [vmem:[#allocation2 + $0x70] sm:$0xff]
        %v1847 = vld [vmem:[#allocation2 + $0x78] sm:$0xff]
        %v1848 = vld [vmem:[#allocation2 + $0x80] sm:$0xff]
        %v1849 = vld [vmem:[#allocation2 + $0x88] sm:$0xff]
        %v1850 = vld [vmem:[#allocation2 + $0x90] sm:$0xff]
        %v1851 = vld [vmem:[#allocation2 + $0x98] sm:$0xff]
        %v1852 = vld [vmem:[#allocation2 + $0xa0] sm:$0xff]
        %v1853 = vld [vmem:[#allocation2 + $0xa8] sm:$0xff]
        %v1854 = vld [vmem:[#allocation2 + $0xb0] sm:$0xff]
        %v1855 = vld [vmem:[#allocation2 + $0xb8] sm:$0xff]
        %v1876 = vunpack.c.l.b16 %v1832
        %v1877 = vunpack.c.h.b16 %v1832
        %v1878 = vunpack.c.l.b16 %v1833
        %v1879 = vunpack.c.h.b16 %v1833
        %v1880 = vunpack.c.l.b16 %v1834
        %v1881 = vunpack.c.h.b16 %v1834
        %v1882 = vunpack.c.l.b16 %v1835
        %v1883 = vunpack.c.h.b16 %v1835
        %v1884 = vunpack.c.l.b16 %v1836
        %v1885 = vunpack.c.l.b16 %v1838
        %v1886 = vunpack.c.h.b16 %v1838
        %v1887 = vunpack.c.l.b16 %v1839
        %v1888 = vunpack.c.h.b16 %v1839
        %v1889 = vunpack.c.l.b16 %v1840
        %v1890 = vunpack.c.h.b16 %v1840
        %v1891 = vunpack.c.l.b16 %v1841
        %v1892 = vunpack.c.h.b16 %v1841
        %v1893 = vunpack.c.l.b16 %v1842
        %v1894 = vunpack.c.l.b16 %v1844
        %v1895 = vunpack.c.h.b16 %v1844
        %v1896 = vunpack.c.l.b16 %v1845
        %v1897 = vunpack.c.h.b16 %v1845
        %v1898 = vunpack.c.l.b16 %v1846
        %v1899 = vunpack.c.h.b16 %v1846
        %v1900 = vunpack.c.l.b16 %v1847
        %v1901 = vunpack.c.h.b16 %v1847
        %v1902 = vunpack.c.l.b16 %v1848
        %v1903 = vunpack.c.l.b16 %v1850
        %v1904 = vunpack.c.h.b16 %v1850
        %v1905 = vunpack.c.l.b16 %v1851
        %v1906 = vunpack.c.h.b16 %v1851
        %v1907 = vunpack.c.l.b16 %v1852
        %v1908 = vunpack.c.h.b16 %v1852
        %v1909 = vunpack.c.l.b16 %v1853
        %v1910 = vunpack.c.h.b16 %v1853
        %v1911 = vunpack.c.l.b16 %v1854
        %v1912 = vpack.c.b16 %v1885, %v1876
        %v1913 = vpack.c.b16 %v1886, %v1877
        %v1914 = vpack.c.b16 %v1887, %v1878
        %v1915 = vpack.c.b16 %v1888, %v1879
        %v1916 = vpack.c.b16 %v1889, %v1880
        %v1917 = vpack.c.b16 %v1890, %v1881
        %v1918 = vpack.c.b16 %v1891, %v1882
        %v1919 = vpack.c.b16 %v1892, %v1883
        %v1920 = vpack.c.b16 %v1893, %v1884
        %v1921 = vpack.c.b16 %v1903, %v1894
        %v1922 = vpack.c.b16 %v1904, %v1895
        %v1923 = vpack.c.b16 %v1905, %v1896
        %v1924 = vpack.c.b16 %v1906, %v1897
        %v1925 = vpack.c.b16 %v1907, %v1898
        %v1926 = vpack.c.b16 %v1908, %v1899
        %v1927 = vpack.c.b16 %v1909, %v1900
        %v1928 = vpack.c.b16 %v1910, %v1901
        %v1929 = vpack.c.b16 %v1911, %v1902
        %1930 = vrot.lane.b32.xlu0 %v1913, 127
        %v1931 = vpop.permute.xlu0 %1930
        %1932 = vrot.lane.b32.xlu0 %v1914, 127
        %v1933 = vpop.permute.xlu0 %1932
        %1934 = vrot.lane.b32.xlu0 %v1915, 127
        %v1935 = vpop.permute.xlu0 %1934
        %1936 = vrot.lane.b32.xlu0 %v1916, 127
        %v1937 = vpop.permute.xlu0 %1936
        %1938 = vrot.lane.b32.xlu0 %v1917, 127
        %v1939 = vpop.permute.xlu0 %1938
        %1940 = vrot.lane.b32.xlu0 %v1918, 127
        %v1941 = vpop.permute.xlu0 %1940
        %1942 = vrot.lane.b32.xlu0 %v1919, 127
        %v1943 = vpop.permute.xlu0 %1942
        %1944 = vrot.lane.b32.xlu0 %v1920, 127
        %v1945 = vpop.permute.xlu0 %1944
        %1946 = vrot.lane.b32.xlu0 %v1922, 127
        %v1947 = vpop.permute.xlu0 %1946
        %1948 = vrot.lane.b32.xlu0 %v1923, 127
        %v1949 = vpop.permute.xlu0 %1948
        %1950 = vrot.lane.b32.xlu0 %v1924, 127
        %v1951 = vpop.permute.xlu0 %1950
        %1952 = vrot.lane.b32.xlu0 %v1925, 127
        %v1953 = vpop.permute.xlu0 %1952
        %1954 = vrot.lane.b32.xlu0 %v1926, 127
        %v1955 = vpop.permute.xlu0 %1954
        %1956 = vrot.lane.b32.xlu0 %v1927, 127
        %v1957 = vpop.permute.xlu0 %1956
        %1958 = vrot.lane.b32.xlu0 %v1928, 127
        %v1959 = vpop.permute.xlu0 %1958
        %1960 = vrot.lane.b32.xlu0 %v1929, 127
        %v1961 = vpop.permute.xlu0 %1960
        %v1962 = vsel %vm505, %v1931, %v1933
        %v1963 = vsel %vm505, %v1933, %v1935
        %v1964 = vsel %vm505, %v1935, %v1937
        %v1965 = vsel %vm505, %v1937, %v1939
        %v1966 = vsel %vm505, %v1939, %v1941
        %v1967 = vsel %vm505, %v1941, %v1943
        %v1968 = vsel %vm505, %v1943, %v1945
        %v1969 = vsel %vm505, %v1947, %v1949
        %v1970 = vsel %vm505, %v1949, %v1951
        %v1971 = vsel %vm505, %v1951, %v1953
        %v1972 = vsel %vm505, %v1953, %v1955
        %v1973 = vsel %vm505, %v1955, %v1957
        %v1974 = vsel %vm505, %v1957, %v1959
        %v1975 = vsel %vm505, %v1959, %v1961
        %v1976 = vunpack.c.h.b16 %v1836
        %v1977 = vunpack.c.h.b16 %v1842
        %v1978 = vunpack.c.h.b16 %v1848
        %v1979 = vunpack.c.h.b16 %v1854
        %v1980 = vpack.c.b16 %v1977, %v1976
        %v1981 = vpack.c.b16 %v1979, %v1978
        %1982 = vrot.lane.b32.xlu0 %v1913, 126
        %v1983 = vpop.permute.xlu0 %1982
        %1984 = vrot.lane.b32.xlu0 %v1914, 126
        %v1985 = vpop.permute.xlu0 %1984
        %1986 = vrot.lane.b32.xlu0 %v1915, 126
        %v1987 = vpop.permute.xlu0 %1986
        %1988 = vrot.lane.b32.xlu0 %v1916, 126
        %v1989 = vpop.permute.xlu0 %1988
        %1990 = vrot.lane.b32.xlu0 %v1917, 126
        %v1991 = vpop.permute.xlu0 %1990
        %1992 = vrot.lane.b32.xlu0 %v1918, 126
        %v1993 = vpop.permute.xlu0 %1992
        %1994 = vrot.lane.b32.xlu0 %v1919, 126
        %v1995 = vpop.permute.xlu0 %1994
        %1996 = vrot.lane.b32.xlu0 %v1920, 126
        %v1997 = vpop.permute.xlu0 %1996
        %1998 = vrot.lane.b32.xlu0 %v1980, 126
        %v1999 = vpop.permute.xlu0 %1998
        %2000 = vrot.lane.b32.xlu0 %v1922, 126
        %v2001 = vpop.permute.xlu0 %2000
        %2002 = vrot.lane.b32.xlu0 %v1923, 126
        %v2003 = vpop.permute.xlu0 %2002
        %2004 = vrot.lane.b32.xlu0 %v1924, 126
        %v2005 = vpop.permute.xlu0 %2004
        %2006 = vrot.lane.b32.xlu0 %v1925, 126
        %v2007 = vpop.permute.xlu0 %2006
        %2008 = vrot.lane.b32.xlu0 %v1926, 126
        %v2009 = vpop.permute.xlu0 %2008
        %2010 = vrot.lane.b32.xlu0 %v1927, 126
        %v2011 = vpop.permute.xlu0 %2010
        %2012 = vrot.lane.b32.xlu0 %v1928, 126
        %v2013 = vpop.permute.xlu0 %2012
        %2014 = vrot.lane.b32.xlu0 %v1929, 126
        %v2015 = vpop.permute.xlu0 %2014
        %2016 = vrot.lane.b32.xlu0 %v1981, 126
        %v2017 = vpop.permute.xlu0 %2016
        %v2018 = vsel %vm539, %v1983, %v1985
        %v2019 = vsel %vm539, %v1985, %v1987
        %v2020 = vsel %vm539, %v1987, %v1989
        %v2021 = vsel %vm539, %v1989, %v1991
        %v2022 = vsel %vm539, %v1991, %v1993
        %v2023 = vsel %vm539, %v1993, %v1995
        %v2024 = vsel %vm539, %v1995, %v1997
        %v2025 = vsel %vm539, %v1997, %v1999
        %v2026 = vsel %vm539, %v2001, %v2003
        %v2027 = vsel %vm539, %v2003, %v2005
        %v2028 = vsel %vm539, %v2005, %v2007
        %v2029 = vsel %vm539, %v2007, %v2009
        %v2030 = vsel %vm539, %v2009, %v2011
        %v2031 = vsel %vm539, %v2011, %v2013
        %v2032 = vsel %vm539, %v2013, %v2015
        %v2033 = vsel %vm539, %v2015, %v2017
        %v2034 = vld [vmem:[%s7] sm:$0xf]
        %v2035 = vld [vmem:[%s7 + $0x4] sm:$0xf]
        %2036 = vrot.lane.b32.xlu0 %v1913, 1
        %v2037 = vpop.permute.xlu0 %2036
        %2038 = vrot.lane.b32.xlu0 %v1914, 1
        %v2039 = vpop.permute.xlu0 %2038
        %2040 = vrot.lane.b32.xlu0 %v1915, 1
        %v2041 = vpop.permute.xlu0 %2040
        %2042 = vrot.lane.b32.xlu0 %v1916, 1
        %v2043 = vpop.permute.xlu0 %2042
        %2044 = vrot.lane.b32.xlu0 %v1917, 1
        %v2045 = vpop.permute.xlu0 %2044
        %2046 = vrot.lane.b32.xlu0 %v1918, 1
        %v2047 = vpop.permute.xlu0 %2046
        %2048 = vrot.lane.b32.xlu0 %v1919, 1
        %v2049 = vpop.permute.xlu0 %2048
        %2050 = vrot.lane.b32.xlu0 %v1920, 1
        %v2051 = vpop.permute.xlu0 %2050
        %2052 = vrot.lane.b32.xlu0 %v1980, 1
        %v2053 = vpop.permute.xlu0 %2052
        %2054 = vrot.lane.b32.xlu0 %v1922, 1
        %v2055 = vpop.permute.xlu0 %2054
        %2056 = vrot.lane.b32.xlu0 %v1923, 1
        %v2057 = vpop.permute.xlu0 %2056
        %2058 = vrot.lane.b32.xlu0 %v1924, 1
        %v2059 = vpop.permute.xlu0 %2058
        %2060 = vrot.lane.b32.xlu0 %v1925, 1
        %v2061 = vpop.permute.xlu0 %2060
        %2062 = vrot.lane.b32.xlu0 %v1926, 1
        %v2063 = vpop.permute.xlu0 %2062
        %2064 = vrot.lane.b32.xlu0 %v1927, 1
        %v2065 = vpop.permute.xlu0 %2064
        %2066 = vrot.lane.b32.xlu0 %v1928, 1
        %v2067 = vpop.permute.xlu0 %2066
        %2068 = vrot.lane.b32.xlu0 %v1929, 1
        %v2069 = vpop.permute.xlu0 %2068
        %2070 = vrot.lane.b32.xlu0 %v1981, 1
        %v2071 = vpop.permute.xlu0 %2070
        %v2072 = vsel %vm610, %v2037, %v2039
        %v2073 = vsel %vm610, %v2039, %v2041
        %v2074 = vsel %vm610, %v2041, %v2043
        %v2075 = vsel %vm610, %v2043, %v2045
        %v2076 = vsel %vm610, %v2045, %v2047
        %v2077 = vsel %vm610, %v2047, %v2049
        %v2078 = vsel %vm610, %v2049, %v2051
        %v2079 = vsel %vm610, %v2051, %v2053
        %v2080 = vsel %vm610, %v2055, %v2057
        %v2081 = vsel %vm610, %v2057, %v2059
        %v2082 = vsel %vm610, %v2059, %v2061
        %v2083 = vsel %vm610, %v2061, %v2063
        %v2084 = vsel %vm610, %v2063, %v2065
        %v2085 = vsel %vm610, %v2065, %v2067
        %v2086 = vsel %vm610, %v2067, %v2069
        %v2087 = vsel %vm610, %v2069, %v2071
        %v2124 = vunpack.c.l.b16 %v1837
        %v2125 = vunpack.c.l.b16 %v1843
        %v2126 = vunpack.c.l.b16 %v1849
        %v2127 = vunpack.c.l.b16 %v1855
        %v2128 = vpack.c.b16 %v2125, %v2124
        %v2129 = vpack.c.b16 %v2127, %v2126
        %2130 = vrot.lane.b32.xlu0 %v1980, 127
        %v2131 = vpop.permute.xlu0 %2130
        %2132 = vrot.lane.b32.xlu0 %v2128, 127
        %v2133 = vpop.permute.xlu0 %2132
        %2134 = vrot.lane.b32.xlu0 %v1981, 127
        %v2135 = vpop.permute.xlu0 %2134
        %2136 = vrot.lane.b32.xlu0 %v2129, 127
        %v2137 = vpop.permute.xlu0 %2136
        %v2138 = vsel %vm505, %v1945, %v2131
        %v2139 = vsel %vm505, %v2131, %v2133
        %v2140 = vsel %vm505, %v1961, %v2135
        %v2141 = vsel %vm505, %v2135, %v2137
        %s2158 = scalar_lea.vmem %s7, 8
        %v2159 = vld [vmem:[%s2158] sm:$0xf]
        %v2160 = vld [vmem:[%s2158 + $0x4] sm:$0xf]
        %v2163 = vunpack.c.l.b16 %v2159
        %v2164 = vunpack.c.l.b16 %v2160
        %v2165 = vpack.c.b16 %v2164, %v2163
        %vm2166 = vcmask 785408
        %v2168 = vsel %vm2166, %v2165, 0
        %2170 = vmatpush.bf16.msra.mxu0 0
        %2171 = vmatpush.bf16.msra.mxu0 0
        %2172 = vmatpush.bf16.msra.mxu0 %v1970
        %2173 = vmatpush.bf16.msra.mxu0 %v1963
        %2174 = vmatpush.bf16.msra.mxu0 %v1923
        %2175 = vmatpush.bf16.msra.mxu0 %v1914
        %2176 = vmatpush.bf16.msra.mxu0 %v2080
        %2177 = vmatpush.bf16.msra.mxu0 %v2072
        %2178 = vmatmul.bf16.gmra.mxu0 %v2168
        %v2179 = vpop.f32.mrf.mxu0
        %v2180 = vadd.f32 0.0, %v2179
        %v2181 = vpop.f32.mrf.mxu0
        %v2182 = vadd.f32 0.0, %v2181
        %2183 = vdwg.mxu0
        %2184 = vmatpush.bf16.msra.mxu0 0
        %2185 = vmatpush.bf16.msra.mxu0 0
        %2186 = vmatpush.bf16.msra.mxu0 %v1971
        %2187 = vmatpush.bf16.msra.mxu0 %v1964
        %2188 = vmatpush.bf16.msra.mxu0 %v1924
        %2189 = vmatpush.bf16.msra.mxu0 %v1915
        %2190 = vmatpush.bf16.msra.mxu0 %v2081
        %2191 = vmatpush.bf16.msra.mxu0 %v2073
        %2192 = vmatmul.bf16.gmra.mxu0 %v2168
        %v2193 = vpop.f32.mrf.mxu0
        %v2194 = vadd.f32 0.0, %v2193
        %v2195 = vpop.f32.mrf.mxu0
        %v2196 = vadd.f32 0.0, %v2195
        %2197 = vdwg.mxu0
        %2198 = vmatpush.bf16.msra.mxu0 0
        %2199 = vmatpush.bf16.msra.mxu0 0
        %2200 = vmatpush.bf16.msra.mxu0 %v1972
        %2201 = vmatpush.bf16.msra.mxu0 %v1965
        %2202 = vmatpush.bf16.msra.mxu0 %v1925
        %2203 = vmatpush.bf16.msra.mxu0 %v1916
        %2204 = vmatpush.bf16.msra.mxu0 %v2082
        %2205 = vmatpush.bf16.msra.mxu0 %v2074
        %2206 = vmatmul.bf16.gmra.mxu0 %v2168
        %v2207 = vpop.f32.mrf.mxu0
        %v2208 = vadd.f32 0.0, %v2207
        %v2209 = vpop.f32.mrf.mxu0
        %v2210 = vadd.f32 0.0, %v2209
        %2211 = vdwg.mxu0
        %2212 = vmatpush.bf16.msra.mxu0 0
        %2213 = vmatpush.bf16.msra.mxu0 0
        %2214 = vmatpush.bf16.msra.mxu0 %v1973
        %2215 = vmatpush.bf16.msra.mxu0 %v1966
        %2216 = vmatpush.bf16.msra.mxu0 %v1926
        %2217 = vmatpush.bf16.msra.mxu0 %v1917
        %2218 = vmatpush.bf16.msra.mxu0 %v2083
        %2219 = vmatpush.bf16.msra.mxu0 %v2075
        %2220 = vmatmul.bf16.gmra.mxu0 %v2168
        %v2221 = vpop.f32.mrf.mxu0
        %v2222 = vadd.f32 0.0, %v2221
        %v2223 = vpop.f32.mrf.mxu0
        %v2224 = vadd.f32 0.0, %v2223
        %2225 = vdwg.mxu0
        %2226 = vmatpush.bf16.msra.mxu0 0
        %2227 = vmatpush.bf16.msra.mxu0 0
        %2228 = vmatpush.bf16.msra.mxu0 %v1974
        %2229 = vmatpush.bf16.msra.mxu0 %v1967
        %2230 = vmatpush.bf16.msra.mxu0 %v1927
        %2231 = vmatpush.bf16.msra.mxu0 %v1918
        %2232 = vmatpush.bf16.msra.mxu0 %v2084
        %2233 = vmatpush.bf16.msra.mxu0 %v2076
        %2234 = vmatmul.bf16.gmra.mxu0 %v2168
        %v2235 = vpop.f32.mrf.mxu0
        %v2236 = vadd.f32 0.0, %v2235
        %v2237 = vpop.f32.mrf.mxu0
        %v2238 = vadd.f32 0.0, %v2237
        %2239 = vdwg.mxu0
        %2240 = vmatpush.bf16.msra.mxu0 0
        %2241 = vmatpush.bf16.msra.mxu0 0
        %2242 = vmatpush.bf16.msra.mxu0 %v1975
        %2243 = vmatpush.bf16.msra.mxu0 %v1968
        %2244 = vmatpush.bf16.msra.mxu0 %v1928
        %2245 = vmatpush.bf16.msra.mxu0 %v1919
        %2246 = vmatpush.bf16.msra.mxu0 %v2085
        %2247 = vmatpush.bf16.msra.mxu0 %v2077
        %2248 = vmatmul.bf16.gmra.mxu0 %v2168
        %v2249 = vpop.f32.mrf.mxu0
        %v2250 = vadd.f32 0.0, %v2249
        %v2251 = vpop.f32.mrf.mxu0
        %v2252 = vadd.f32 0.0, %v2251
        %2253 = vdwg.mxu0
        %2254 = vmatpush.bf16.msra.mxu0 0
        %2255 = vmatpush.bf16.msra.mxu0 0
        %2256 = vmatpush.bf16.msra.mxu0 %v2140
        %2257 = vmatpush.bf16.msra.mxu0 %v2138
        %2258 = vmatpush.bf16.msra.mxu0 %v1929
        %2259 = vmatpush.bf16.msra.mxu0 %v1920
        %2260 = vmatpush.bf16.msra.mxu0 %v2086
        %2261 = vmatpush.bf16.msra.mxu0 %v2078
        %2262 = vmatmul.bf16.gmra.mxu0 %v2168
        %v2263 = vpop.f32.mrf.mxu0
        %v2264 = vadd.f32 0.0, %v2263
        %v2265 = vpop.f32.mrf.mxu0
        %v2266 = vadd.f32 0.0, %v2265
        %2267 = vdwg.mxu0
        %2268 = vmatpush.bf16.msra.mxu0 0
        %2269 = vmatpush.bf16.msra.mxu0 0
        %2270 = vmatpush.bf16.msra.mxu0 %v2141
        %2271 = vmatpush.bf16.msra.mxu0 %v2139
        %2272 = vmatpush.bf16.msra.mxu0 %v1981
        %2273 = vmatpush.bf16.msra.mxu0 %v1980
        %2274 = vmatpush.bf16.msra.mxu0 %v2087
        %2275 = vmatpush.bf16.msra.mxu0 %v2079
        %2276 = vmatmul.bf16.gmra.mxu0 %v2168
        %v2277 = vpop.f32.mrf.mxu0
        %v2278 = vadd.f32 0.0, %v2277
        %v2279 = vpop.f32.mrf.mxu0
        %v2280 = vadd.f32 0.0, %v2279
        %2281 = vdwg.mxu0
        %v2284 = vunpack.c.l.b16 %v2034
        %v2285 = vunpack.c.l.b16 %v2035
        %v2286 = vpack.c.b16 %v2285, %v2284
        %2287 = vrot.lane.b32.xlu0 %v1912, 1
        %v2288 = vpop.permute.xlu0 %2287
        %2289 = vrot.lane.b32.xlu0 %v1921, 1
        %v2290 = vpop.permute.xlu0 %2289
        %2291 = vrot.lane.b32.xlu0 %v1931, 1
        %v2292 = vpop.permute.xlu0 %2291
        %2293 = vrot.lane.b32.xlu0 %v1962, 1
        %v2294 = vpop.permute.xlu0 %2293
        %2295 = vrot.lane.b32.xlu0 %v1963, 1
        %v2296 = vpop.permute.xlu0 %2295
        %2297 = vrot.lane.b32.xlu0 %v1964, 1
        %v2298 = vpop.permute.xlu0 %2297
        %2299 = vrot.lane.b32.xlu0 %v1965, 1
        %v2300 = vpop.permute.xlu0 %2299
        %2301 = vrot.lane.b32.xlu0 %v1966, 1
        %v2302 = vpop.permute.xlu0 %2301
        %2303 = vrot.lane.b32.xlu0 %v1967, 1
        %v2304 = vpop.permute.xlu0 %2303
        %2305 = vrot.lane.b32.xlu0 %v1968, 1
        %v2306 = vpop.permute.xlu0 %2305
        %2307 = vrot.lane.b32.xlu0 %v1945, 1
        %v2308 = vpop.permute.xlu0 %2307
        %2309 = vrot.lane.b32.xlu0 %v1947, 1
        %v2310 = vpop.permute.xlu0 %2309
        %2311 = vrot.lane.b32.xlu0 %v1969, 1
        %v2312 = vpop.permute.xlu0 %2311
        %2313 = vrot.lane.b32.xlu0 %v1970, 1
        %v2314 = vpop.permute.xlu0 %2313
        %2315 = vrot.lane.b32.xlu0 %v1971, 1
        %v2316 = vpop.permute.xlu0 %2315
        %2317 = vrot.lane.b32.xlu0 %v1972, 1
        %v2318 = vpop.permute.xlu0 %2317
        %2319 = vrot.lane.b32.xlu0 %v1973, 1
        %v2320 = vpop.permute.xlu0 %2319
        %2321 = vrot.lane.b32.xlu0 %v1974, 1
        %v2322 = vpop.permute.xlu0 %2321
        %2323 = vrot.lane.b32.xlu0 %v1975, 1
        %v2324 = vpop.permute.xlu0 %2323
        %2325 = vrot.lane.b32.xlu0 %v1961, 1
        %v2326 = vpop.permute.xlu0 %2325
        %2327 = vrot.lane.b32.xlu0 %v1983, 1
        %v2328 = vpop.permute.xlu0 %2327
        %2329 = vrot.lane.b32.xlu0 %v2018, 1
        %v2330 = vpop.permute.xlu0 %2329
        %2331 = vrot.lane.b32.xlu0 %v2019, 1
        %v2332 = vpop.permute.xlu0 %2331
        %2333 = vrot.lane.b32.xlu0 %v2020, 1
        %v2334 = vpop.permute.xlu0 %2333
        %2335 = vrot.lane.b32.xlu0 %v2021, 1
        %v2336 = vpop.permute.xlu0 %2335
        %2337 = vrot.lane.b32.xlu0 %v2022, 1
        %v2338 = vpop.permute.xlu0 %2337
        %2339 = vrot.lane.b32.xlu0 %v2023, 1
        %v2340 = vpop.permute.xlu0 %2339
        %2341 = vrot.lane.b32.xlu0 %v2024, 1
        %v2342 = vpop.permute.xlu0 %2341
        %2343 = vrot.lane.b32.xlu0 %v2025, 1
        %v2344 = vpop.permute.xlu0 %2343
        %2345 = vrot.lane.b32.xlu0 %v2001, 1
        %v2346 = vpop.permute.xlu0 %2345
        %2347 = vrot.lane.b32.xlu0 %v2026, 1
        %v2348 = vpop.permute.xlu0 %2347
        %2349 = vrot.lane.b32.xlu0 %v2027, 1
        %v2350 = vpop.permute.xlu0 %2349
        %2351 = vrot.lane.b32.xlu0 %v2028, 1
        %v2352 = vpop.permute.xlu0 %2351
        %2353 = vrot.lane.b32.xlu0 %v2029, 1
        %v2354 = vpop.permute.xlu0 %2353
        %2355 = vrot.lane.b32.xlu0 %v2030, 1
        %v2356 = vpop.permute.xlu0 %2355
        %2357 = vrot.lane.b32.xlu0 %v2031, 1
        %v2358 = vpop.permute.xlu0 %2357
        %2359 = vrot.lane.b32.xlu0 %v2032, 1
        %v2360 = vpop.permute.xlu0 %2359
        %2361 = vrot.lane.b32.xlu0 %v2033, 1
        %v2362 = vpop.permute.xlu0 %2361
        %v2363 = vsel %vm610, %v2288, %v2037
        %v2364 = vsel %vm610, %v2290, %v2055
        %v2365 = vsel %vm610, %v2292, %v2294
        %v2366 = vsel %vm610, %v2294, %v2296
        %v2367 = vsel %vm610, %v2296, %v2298
        %v2368 = vsel %vm610, %v2298, %v2300
        %v2369 = vsel %vm610, %v2300, %v2302
        %v2370 = vsel %vm610, %v2302, %v2304
        %v2371 = vsel %vm610, %v2304, %v2306
        %v2372 = vsel %vm610, %v2306, %v2308
        %v2373 = vsel %vm610, %v2310, %v2312
        %v2374 = vsel %vm610, %v2312, %v2314
        %v2375 = vsel %vm610, %v2314, %v2316
        %v2376 = vsel %vm610, %v2316, %v2318
        %v2377 = vsel %vm610, %v2318, %v2320
        %v2378 = vsel %vm610, %v2320, %v2322
        %v2379 = vsel %vm610, %v2322, %v2324
        %v2380 = vsel %vm610, %v2324, %v2326
        %v2381 = vsel %vm610, %v2328, %v2330
        %v2382 = vsel %vm610, %v2330, %v2332
        %v2383 = vsel %vm610, %v2332, %v2334
        %v2384 = vsel %vm610, %v2334, %v2336
        %v2385 = vsel %vm610, %v2336, %v2338
        %v2386 = vsel %vm610, %v2338, %v2340
        %v2387 = vsel %vm610, %v2340, %v2342
        %v2388 = vsel %vm610, %v2342, %v2344
        %v2389 = vsel %vm610, %v2346, %v2348
        %v2390 = vsel %vm610, %v2348, %v2350
        %v2391 = vsel %vm610, %v2350, %v2352
        %v2392 = vsel %vm610, %v2352, %v2354
        %v2393 = vsel %vm610, %v2354, %v2356
        %v2394 = vsel %vm610, %v2356, %v2358
        %v2395 = vsel %vm610, %v2358, %v2360
        %v2396 = vsel %vm610, %v2360, %v2362
        %v2432 = vsel %vm2166, %v2286, 0
        %2434 = vmatpush.bf16.msra.mxu0 0
        %2435 = vmatpush.bf16.msra.mxu0 0
        %2436 = vmatpush.bf16.msra.mxu0 %v2389
        %2437 = vmatpush.bf16.msra.mxu0 %v2381
        %2438 = vmatpush.bf16.msra.mxu0 %v2373
        %2439 = vmatpush.bf16.msra.mxu0 %v2365
        %2440 = vmatpush.bf16.msra.mxu0 %v2364
        %2441 = vmatpush.bf16.msra.mxu0 %v2363
        %2442 = vmatmul.bf16.gmra.mxu0 %v2432
        %v2443 = vpop.f32.mrf.mxu0
        %v2444 = vadd.f32 %v2180, %v2443
        %v2445 = vpop.f32.mrf.mxu0
        %v2446 = vadd.f32 %v2182, %v2445
        %2447 = vdwg.mxu0
        %2448 = vmatpush.bf16.msra.mxu0 0
        %2449 = vmatpush.bf16.msra.mxu0 0
        %2450 = vmatpush.bf16.msra.mxu0 %v2390
        %2451 = vmatpush.bf16.msra.mxu0 %v2382
        %2452 = vmatpush.bf16.msra.mxu0 %v2374
        %2453 = vmatpush.bf16.msra.mxu0 %v2366
        %2454 = vmatpush.bf16.msra.mxu0 %v2080
        %2455 = vmatpush.bf16.msra.mxu0 %v2072
        %2456 = vmatmul.bf16.gmra.mxu0 %v2432
        %v2457 = vpop.f32.mrf.mxu0
        %v2458 = vadd.f32 %v2194, %v2457
        %v2459 = vpop.f32.mrf.mxu0
        %v2460 = vadd.f32 %v2196, %v2459
        %2461 = vdwg.mxu0
        %2462 = vmatpush.bf16.msra.mxu0 0
        %2463 = vmatpush.bf16.msra.mxu0 0
        %2464 = vmatpush.bf16.msra.mxu0 %v2391
        %2465 = vmatpush.bf16.msra.mxu0 %v2383
        %2466 = vmatpush.bf16.msra.mxu0 %v2375
        %2467 = vmatpush.bf16.msra.mxu0 %v2367
        %2468 = vmatpush.bf16.msra.mxu0 %v2081
        %2469 = vmatpush.bf16.msra.mxu0 %v2073
        %2470 = vmatmul.bf16.gmra.mxu0 %v2432
        %v2471 = vpop.f32.mrf.mxu0
        %v2472 = vadd.f32 %v2208, %v2471
        %v2473 = vpop.f32.mrf.mxu0
        %v2474 = vadd.f32 %v2210, %v2473
        %2475 = vdwg.mxu0
        %2476 = vmatpush.bf16.msra.mxu0 0
        %2477 = vmatpush.bf16.msra.mxu0 0
        %2478 = vmatpush.bf16.msra.mxu0 %v2392
        %2479 = vmatpush.bf16.msra.mxu0 %v2384
        %2480 = vmatpush.bf16.msra.mxu0 %v2376
        %2481 = vmatpush.bf16.msra.mxu0 %v2368
        %2482 = vmatpush.bf16.msra.mxu0 %v2082
        %2483 = vmatpush.bf16.msra.mxu0 %v2074
        %2484 = vmatmul.bf16.gmra.mxu0 %v2432
        %v2485 = vpop.f32.mrf.mxu0
        %v2486 = vadd.f32 %v2222, %v2485
        %v2487 = vpop.f32.mrf.mxu0
        %v2488 = vadd.f32 %v2224, %v2487
        %2489 = vdwg.mxu0
        %2490 = vmatpush.bf16.msra.mxu0 0
        %2491 = vmatpush.bf16.msra.mxu0 0
        %2492 = vmatpush.bf16.msra.mxu0 %v2393
        %2493 = vmatpush.bf16.msra.mxu0 %v2385
        %2494 = vmatpush.bf16.msra.mxu0 %v2377
        %2495 = vmatpush.bf16.msra.mxu0 %v2369
        %2496 = vmatpush.bf16.msra.mxu0 %v2083
        %2497 = vmatpush.bf16.msra.mxu0 %v2075
        %2498 = vmatmul.bf16.gmra.mxu0 %v2432
        %v2499 = vpop.f32.mrf.mxu0
        %v2500 = vadd.f32 %v2236, %v2499
        %v2501 = vpop.f32.mrf.mxu0
        %v2502 = vadd.f32 %v2238, %v2501
        %2503 = vdwg.mxu0
        %2504 = vmatpush.bf16.msra.mxu0 0
        %2505 = vmatpush.bf16.msra.mxu0 0
        %2506 = vmatpush.bf16.msra.mxu0 %v2394
        %2507 = vmatpush.bf16.msra.mxu0 %v2386
        %2508 = vmatpush.bf16.msra.mxu0 %v2378
        %2509 = vmatpush.bf16.msra.mxu0 %v2370
        %2510 = vmatpush.bf16.msra.mxu0 %v2084
        %2511 = vmatpush.bf16.msra.mxu0 %v2076
        %2512 = vmatmul.bf16.gmra.mxu0 %v2432
        %v2513 = vpop.f32.mrf.mxu0
        %v2514 = vadd.f32 %v2250, %v2513
        %v2515 = vpop.f32.mrf.mxu0
        %v2516 = vadd.f32 %v2252, %v2515
        %2517 = vdwg.mxu0
        %2518 = vmatpush.bf16.msra.mxu0 0
        %2519 = vmatpush.bf16.msra.mxu0 0
        %2520 = vmatpush.bf16.msra.mxu0 %v2395
        %2521 = vmatpush.bf16.msra.mxu0 %v2387
        %2522 = vmatpush.bf16.msra.mxu0 %v2379
        %2523 = vmatpush.bf16.msra.mxu0 %v2371
        %2524 = vmatpush.bf16.msra.mxu0 %v2085
        %2525 = vmatpush.bf16.msra.mxu0 %v2077
        %2526 = vmatmul.bf16.gmra.mxu0 %v2432
        %v2527 = vpop.f32.mrf.mxu0
        %v2528 = vadd.f32 %v2264, %v2527
        %v2529 = vpop.f32.mrf.mxu0
        %v2530 = vadd.f32 %v2266, %v2529
        %2531 = vdwg.mxu0
        %2532 = vmatpush.bf16.msra.mxu0 0
        %2533 = vmatpush.bf16.msra.mxu0 0
        %2534 = vmatpush.bf16.msra.mxu0 %v2396
        %2535 = vmatpush.bf16.msra.mxu0 %v2388
        %2536 = vmatpush.bf16.msra.mxu0 %v2380
        %2537 = vmatpush.bf16.msra.mxu0 %v2372
        %2538 = vmatpush.bf16.msra.mxu0 %v2086
        %2539 = vmatpush.bf16.msra.mxu0 %v2078
        %2540 = vmatmul.bf16.gmra.mxu0 %v2432
        %v2541 = vpop.f32.mrf.mxu0
        %v2542 = vadd.f32 %v2278, %v2541
        %v2543 = vpop.f32.mrf.mxu0
        %v2544 = vadd.f32 %v2280, %v2543
        %2545 = vdwg.mxu0
        %v2546 = vunpack.c.h.b16 %v1837
        %v2547 = vunpack.c.h.b16 %v1843
        %v2548 = vunpack.c.h.b16 %v1849
        %v2549 = vunpack.c.h.b16 %v1855
        %v2550 = vpack.c.b16 %v2547, %v2546
        %v2551 = vpack.c.b16 %v2549, %v2548
        %2552 = vrot.lane.b32.xlu0 %v2128, 126
        %v2553 = vpop.permute.xlu0 %2552
        %2554 = vrot.lane.b32.xlu0 %v2550, 126
        %v2555 = vpop.permute.xlu0 %2554
        %2556 = vrot.lane.b32.xlu0 %v2129, 126
        %v2557 = vpop.permute.xlu0 %2556
        %2558 = vrot.lane.b32.xlu0 %v2551, 126
        %v2559 = vpop.permute.xlu0 %2558
        %v2560 = vsel %vm539, %v1999, %v2553
        %v2561 = vsel %vm539, %v2553, %v2555
        %v2562 = vsel %vm539, %v2017, %v2557
        %v2563 = vsel %vm539, %v2557, %v2559
        %s2564 = scalar_lea.vmem %s7, 16
        %v2565 = vld [vmem:[%s2564] sm:$0xf]
        %v2566 = vld [vmem:[%s2564 + $0x4] sm:$0xf]
        %v2569 = vunpack.c.l.b16 %v2565
        %v2570 = vunpack.c.l.b16 %v2566
        %v2571 = vpack.c.b16 %v2570, %v2569
        %2572 = vrot.lane.b32.xlu0 %v2128, 1
        %v2573 = vpop.permute.xlu0 %2572
        %2574 = vrot.lane.b32.xlu0 %v2129, 1
        %v2575 = vpop.permute.xlu0 %2574
        %2576 = vrot.lane.b32.xlu0 %v1935, 1
        %v2577 = vpop.permute.xlu0 %2576
        %2578 = vrot.lane.b32.xlu0 %v2138, 1
        %v2579 = vpop.permute.xlu0 %2578
        %2580 = vrot.lane.b32.xlu0 %v2139, 1
        %v2581 = vpop.permute.xlu0 %2580
        %2582 = vrot.lane.b32.xlu0 %v2133, 1
        %v2583 = vpop.permute.xlu0 %2582
        %2584 = vrot.lane.b32.xlu0 %v1951, 1
        %v2585 = vpop.permute.xlu0 %2584
        %2586 = vrot.lane.b32.xlu0 %v2140, 1
        %v2587 = vpop.permute.xlu0 %2586
        %2588 = vrot.lane.b32.xlu0 %v2141, 1
        %v2589 = vpop.permute.xlu0 %2588
        %2590 = vrot.lane.b32.xlu0 %v2137, 1
        %v2591 = vpop.permute.xlu0 %2590
        %2592 = vrot.lane.b32.xlu0 %v1987, 1
        %v2593 = vpop.permute.xlu0 %2592
        %2594 = vrot.lane.b32.xlu0 %v2560, 1
        %v2595 = vpop.permute.xlu0 %2594
        %2596 = vrot.lane.b32.xlu0 %v2561, 1
        %v2597 = vpop.permute.xlu0 %2596
        %2598 = vrot.lane.b32.xlu0 %v2005, 1
        %v2599 = vpop.permute.xlu0 %2598
        %2600 = vrot.lane.b32.xlu0 %v2562, 1
        %v2601 = vpop.permute.xlu0 %2600
        %2602 = vrot.lane.b32.xlu0 %v2563, 1
        %v2603 = vpop.permute.xlu0 %2602
        %v2604 = vsel %vm610, %v2053, %v2573
        %v2605 = vsel %vm610, %v2071, %v2575
        %v2606 = vsel %vm610, %v2577, %v2298
        %v2607 = vsel %vm610, %v2306, %v2579
        %v2608 = vsel %vm610, %v2579, %v2581
        %v2609 = vsel %vm610, %v2581, %v2583
        %v2610 = vsel %vm610, %v2585, %v2316
        %v2611 = vsel %vm610, %v2324, %v2587
        %v2612 = vsel %vm610, %v2587, %v2589
        %v2613 = vsel %vm610, %v2589, %v2591
        %v2614 = vsel %vm610, %v2593, %v2334
        %v2615 = vsel %vm610, %v2344, %v2595
        %v2616 = vsel %vm610, %v2595, %v2597
        %v2617 = vsel %vm610, %v2599, %v2352
        %v2618 = vsel %vm610, %v2362, %v2601
        %v2619 = vsel %vm610, %v2601, %v2603
        %v2637 = vsel %vm2166, %v2571, 0
        %2639 = vmatpush.bf16.msra.mxu0 0
        %2640 = vmatpush.bf16.msra.mxu0 0
        %2641 = vmatpush.bf16.msra.mxu0 %v2617
        %2642 = vmatpush.bf16.msra.mxu0 %v2614
        %2643 = vmatpush.bf16.msra.mxu0 %v2610
        %2644 = vmatpush.bf16.msra.mxu0 %v2606
        %2645 = vmatpush.bf16.msra.mxu0 %v2081
        %2646 = vmatpush.bf16.msra.mxu0 %v2073
        %2647 = vmatmul.bf16.gmra.mxu0 %v2637
        %v2648 = vpop.f32.mrf.mxu0
        %v2649 = vadd.f32 0.0, %v2648
        %v2650 = vpop.f32.mrf.mxu0
        %v2651 = vadd.f32 0.0, %v2650
        %2652 = vdwg.mxu0
        %2653 = vmatpush.bf16.msra.mxu0 0
        %2654 = vmatpush.bf16.msra.mxu0 0
        %2655 = vmatpush.bf16.msra.mxu0 %v2392
        %2656 = vmatpush.bf16.msra.mxu0 %v2384
        %2657 = vmatpush.bf16.msra.mxu0 %v2376
        %2658 = vmatpush.bf16.msra.mxu0 %v2368
        %2659 = vmatpush.bf16.msra.mxu0 %v2082
        %2660 = vmatpush.bf16.msra.mxu0 %v2074
        %2661 = vmatmul.bf16.gmra.mxu0 %v2637
        %v2662 = vpop.f32.mrf.mxu0
        %v2663 = vadd.f32 0.0, %v2662
        %v2664 = vpop.f32.mrf.mxu0
        %v2665 = vadd.f32 0.0, %v2664
        %2666 = vdwg.mxu0
        %2667 = vmatpush.bf16.msra.mxu0 0
        %2668 = vmatpush.bf16.msra.mxu0 0
        %2669 = vmatpush.bf16.msra.mxu0 %v2393
        %2670 = vmatpush.bf16.msra.mxu0 %v2385
        %2671 = vmatpush.bf16.msra.mxu0 %v2377
        %2672 = vmatpush.bf16.msra.mxu0 %v2369
        %2673 = vmatpush.bf16.msra.mxu0 %v2083
        %2674 = vmatpush.bf16.msra.mxu0 %v2075
        %2675 = vmatmul.bf16.gmra.mxu0 %v2637
        %v2676 = vpop.f32.mrf.mxu0
        %v2677 = vadd.f32 0.0, %v2676
        %v2678 = vpop.f32.mrf.mxu0
        %v2679 = vadd.f32 0.0, %v2678
        %2680 = vdwg.mxu0
        %2681 = vmatpush.bf16.msra.mxu0 0
        %2682 = vmatpush.bf16.msra.mxu0 0
        %2683 = vmatpush.bf16.msra.mxu0 %v2394
        %2684 = vmatpush.bf16.msra.mxu0 %v2386
        %2685 = vmatpush.bf16.msra.mxu0 %v2378
        %2686 = vmatpush.bf16.msra.mxu0 %v2370
        %2687 = vmatpush.bf16.msra.mxu0 %v2084
        %2688 = vmatpush.bf16.msra.mxu0 %v2076
        %2689 = vmatmul.bf16.gmra.mxu0 %v2637
        %v2690 = vpop.f32.mrf.mxu0
        %v2691 = vadd.f32 0.0, %v2690
        %v2692 = vpop.f32.mrf.mxu0
        %v2693 = vadd.f32 0.0, %v2692
        %2694 = vdwg.mxu0
        %2695 = vmatpush.bf16.msra.mxu0 0
        %2696 = vmatpush.bf16.msra.mxu0 0
        %2697 = vmatpush.bf16.msra.mxu0 %v2395
        %2698 = vmatpush.bf16.msra.mxu0 %v2387
        %2699 = vmatpush.bf16.msra.mxu0 %v2379
        %2700 = vmatpush.bf16.msra.mxu0 %v2371
        %2701 = vmatpush.bf16.msra.mxu0 %v2085
        %2702 = vmatpush.bf16.msra.mxu0 %v2077
        %2703 = vmatmul.bf16.gmra.mxu0 %v2637
        %v2704 = vpop.f32.mrf.mxu0
        %v2705 = vadd.f32 0.0, %v2704
        %v2706 = vpop.f32.mrf.mxu0
        %v2707 = vadd.f32 0.0, %v2706
        %2708 = vdwg.mxu0
        %2709 = vmatpush.bf16.msra.mxu0 0
        %2710 = vmatpush.bf16.msra.mxu0 0
        %2711 = vmatpush.bf16.msra.mxu0 %v2396
        %2712 = vmatpush.bf16.msra.mxu0 %v2388
        %2713 = vmatpush.bf16.msra.mxu0 %v2611
        %2714 = vmatpush.bf16.msra.mxu0 %v2607
        %2715 = vmatpush.bf16.msra.mxu0 %v2086
        %2716 = vmatpush.bf16.msra.mxu0 %v2078
        %2717 = vmatmul.bf16.gmra.mxu0 %v2637
        %v2718 = vpop.f32.mrf.mxu0
        %v2719 = vadd.f32 0.0, %v2718
        %v2720 = vpop.f32.mrf.mxu0
        %v2721 = vadd.f32 0.0, %v2720
        %2722 = vdwg.mxu0
        %2723 = vmatpush.bf16.msra.mxu0 0
        %2724 = vmatpush.bf16.msra.mxu0 0
        %2725 = vmatpush.bf16.msra.mxu0 %v2618
        %2726 = vmatpush.bf16.msra.mxu0 %v2615
        %2727 = vmatpush.bf16.msra.mxu0 %v2612
        %2728 = vmatpush.bf16.msra.mxu0 %v2608
        %2729 = vmatpush.bf16.msra.mxu0 %v2087
        %2730 = vmatpush.bf16.msra.mxu0 %v2079
        %2731 = vmatmul.bf16.gmra.mxu0 %v2637
        %v2732 = vpop.f32.mrf.mxu0
        %v2733 = vadd.f32 0.0, %v2732
        %v2734 = vpop.f32.mrf.mxu0
        %v2735 = vadd.f32 0.0, %v2734
        %2736 = vdwg.mxu0
        %2737 = vmatpush.bf16.msra.mxu0 0
        %2738 = vmatpush.bf16.msra.mxu0 0
        %2739 = vmatpush.bf16.msra.mxu0 %v2619
        %2740 = vmatpush.bf16.msra.mxu0 %v2616
        %2741 = vmatpush.bf16.msra.mxu0 %v2613
        %2742 = vmatpush.bf16.msra.mxu0 %v2609
        %2743 = vmatpush.bf16.msra.mxu0 %v2605
        %2744 = vmatpush.bf16.msra.mxu0 %v2604
        %2745 = vmatmul.bf16.gmra.mxu0 %v2637
        %v2746 = vpop.f32.mrf.mxu0
        %v2747 = vadd.f32 0.0, %v2746
        %v2748 = vpop.f32.mrf.mxu0
        %v2749 = vadd.f32 0.0, %v2748
        %2750 = vdwg.mxu0
        %v2751 = vadd.f32 %v2444, %v2649
        %v2752 = vadd.f32 %v2458, %v2663
        %v2753 = vadd.f32 %v2472, %v2677
        %v2754 = vadd.f32 %v2486, %v2691
        %v2755 = vadd.f32 %v2500, %v2705
        %v2756 = vadd.f32 %v2514, %v2719
        %v2757 = vadd.f32 %v2528, %v2733
        %v2758 = vadd.f32 %v2542, %v2747
        %v2759 = vadd.f32 %v2446, %v2651
        %v2760 = vadd.f32 %v2460, %v2665
        %v2761 = vadd.f32 %v2474, %v2679
        %v2762 = vadd.f32 %v2488, %v2693
        %v2763 = vadd.f32 %v2502, %v2707
        %v2764 = vadd.f32 %v2516, %v2721
        %v2765 = vadd.f32 %v2530, %v2735
        %v2766 = vadd.f32 %v2544, %v2749
        %v2767 = vld [vmem:[%s8] sm:$0xff]
        %v2768 = vld [vmem:[%s8 + $0x8] sm:$0xff]
        %2770 = vset.pattern.permute.xlu0 0
        %2771 = vperm.xlu0 %2770, %v2767
        %v2772 = vpop.permute.xlu0 %2771
        %2775 = vset.pattern.permute.xlu0 0
        %2776 = vperm.xlu0 %2775, %v2768
        %v2777 = vpop.permute.xlu0 %2776
        %v2779 = vadd.f32 %v2751, %v2772
        %v2780 = vadd.f32 %v2752, %v2772
        %v2781 = vadd.f32 %v2753, %v2772
        %v2782 = vadd.f32 %v2754, %v2772
        %v2783 = vadd.f32 %v2755, %v2772
        %v2784 = vadd.f32 %v2756, %v2772
        %v2785 = vadd.f32 %v2757, %v2772
        %v2786 = vadd.f32 %v2758, %v2772
        %v2787 = vadd.f32 %v2759, %v2777
        %v2788 = vadd.f32 %v2760, %v2777
        %v2789 = vadd.f32 %v2761, %v2777
        %v2790 = vadd.f32 %v2762, %v2777
        %v2791 = vadd.f32 %v2763, %v2777
        %v2792 = vadd.f32 %v2764, %v2777
        %v2793 = vadd.f32 %v2765, %v2777
        %v2794 = vadd.f32 %v2766, %v2777
        %v2795 = vld [vmem:[%s380] sm:$0xff]
        %v2796 = vld [vmem:[%s380 + $0x8] sm:$0xff]
        %v2797 = vld [vmem:[%s380 + $0x10] sm:$0xff]
        %v2798 = vld [vmem:[%s380 + $0x18] sm:$0xff]
        %v2799 = vld [vmem:[%s380 + $0x20] sm:$0xff]
        %v2800 = vld [vmem:[%s380 + $0x28] sm:$0xff]
        %v2801 = vld [vmem:[%s380 + $0x30] sm:$0xff]
        %v2802 = vld [vmem:[%s380 + $0x38] sm:$0xff]
        %v2803 = vld [vmem:[%s443] sm:$0xff]
        %2805 = vset.pattern.permute.xlu0 0
        %2806 = vperm.xlu0 %2805, %v2803
        %v2807 = vpop.permute.xlu0 %2806
        %v2809 = vmul.f32 %v2795, %v2807
        %v2810 = vmul.f32 %v2796, %v2807
        %v2811 = vmul.f32 %v2797, %v2807
        %v2812 = vmul.f32 %v2798, %v2807
        %v2813 = vmul.f32 %v2799, %v2807
        %v2814 = vmul.f32 %v2800, %v2807
        %v2815 = vmul.f32 %v2801, %v2807
        %v2816 = vmul.f32 %v2802, %v2807
        %v2817 = vld [vmem:[%s447] sm:$0xff]
        %2819 = vset.pattern.permute.xlu0 0
        %2820 = vperm.xlu0 %2819, %v2817
        %v2821 = vpop.permute.xlu0 %2820
        %v2823 = vadd.f32 %v2809, %v2821
        %v2824 = vadd.f32 %v2810, %v2821
        %v2825 = vadd.f32 %v2811, %v2821
        %v2826 = vadd.f32 %v2812, %v2821
        %v2827 = vadd.f32 %v2813, %v2821
        %v2828 = vadd.f32 %v2814, %v2821
        %v2829 = vadd.f32 %v2815, %v2821
        %v2830 = vadd.f32 %v2816, %v2821
        %v2831 = vadd.f32 %v2779, 1.0
        %v2832 = vadd.f32 %v2780, 1.0
        %v2833 = vadd.f32 %v2781, 1.0
        %v2834 = vadd.f32 %v2782, 1.0
        %v2835 = vadd.f32 %v2783, 1.0
        %v2836 = vadd.f32 %v2784, 1.0
        %v2837 = vadd.f32 %v2785, 1.0
        %v2838 = vadd.f32 %v2786, 1.0
        %v2839 = vmul.f32 %v2823, %v2831
        %v2840 = vmul.f32 %v2824, %v2832
        %v2841 = vmul.f32 %v2825, %v2833
        %v2842 = vmul.f32 %v2826, %v2834
        %v2843 = vmul.f32 %v2827, %v2835
        %v2844 = vmul.f32 %v2828, %v2836
        %v2845 = vmul.f32 %v2829, %v2837
        %v2846 = vmul.f32 %v2830, %v2838
        %v2847 = vadd.f32 %v2839, %v2787
        %v2848 = vadd.f32 %v2840, %v2788
        %v2849 = vadd.f32 %v2841, %v2789
        %v2850 = vadd.f32 %v2842, %v2790
        %v2851 = vadd.f32 %v2843, %v2791
        %v2852 = vadd.f32 %v2844, %v2792
        %v2853 = vadd.f32 %v2845, %v2793
        %v2854 = vadd.f32 %v2846, %v2794
        %2855 = vst [vmem:[%s438] sm:$0xff] %v2847
        %2856 = vst [vmem:[%s438 + $0x8] sm:$0xff] %v2848
        %2857 = vst [vmem:[%s438 + $0x10] sm:$0xff] %v2849
        %2858 = vst [vmem:[%s438 + $0x18] sm:$0xff] %v2850
        %2859 = vst [vmem:[%s438 + $0x20] sm:$0xff] %v2851
        %2860 = vst [vmem:[%s438 + $0x28] sm:$0xff] %v2852
        %2861 = vst [vmem:[%s438 + $0x30] sm:$0xff] %v2853
        %2862 = vst [vmem:[%s438 + $0x38] sm:$0xff] %v2854
        %s2863 = sand.u32 %s264, 1
        %s2864 = scalar_lea.sflag [#allocation5], %s2863
        %s2865 = sand.u32 %s264, 1
        %s2866 = smul.addr %s2865, 64
        %s2867 = scalar_lea.vmem [#allocation8], %s2866
        // Predicated region
        $region73: #{tpu_custom_call.1} parent=55 // pred_check
          %p2868 = pneg %p274
        $region74: #{tpu_custom_call.1} parent=55 // pred_check_branch
          %2870 = sbr.rel (%p2868) target = $region76
        $region75: #{tpu_custom_call.1} parent=55 // pred_region
          %s2871 = smul.u32 8, %s34
          %2873 = vsyncadd %s2864, 0
          %s2874 = smul.addr %s33, 16
          %s2875 = sadd.s32 %s2871, %s2874
          %s2876 = smul.addr %s2875, 8
          %s2877 = scalar_lea.hbm %s9, %s2876
          %s2879 = sshll.u32 %s2867, 4
          %s2880 = int_to_ptr.vmem [resolvable:$true] %s2879
          %s2881 = sshll.u32 %s2877, 4
          %s2882 = int_to_ptr.hbm [resolvable:$true] %s2881
          %2884 = dma.vmem_to_hbm [thread:$0]  %s2880, 1024, %s2882, %s2864
        $region76: #{tpu_custom_call.1} parent=55 // pred_fallthru
          _
      $region56: #{tpu_custom_call.1} parent=5 // pred_fallthru
        _
      %p2885 = scmp.le.s32.totalorder 2, %s24
      // Predicated region
      $region77: #{tpu_custom_call.1} parent=5 // pred_check
        %p2886 = pneg %p2885
      $region78: #{tpu_custom_call.1} parent=5 // pred_check_branch
        %2888 = sbr.rel (%p2886) target = $region80
      $region79: #{tpu_custom_call.1} parent=5 // pred_region
        %s2889 = ssub.s32 %s24, 2
        // Predicated region
        $region81: #{tpu_custom_call.1} parent=79 // pred_check
          %p2890 = pneg %p280
        $region82: #{tpu_custom_call.1} parent=79 // pred_check_branch
          %2892 = sbr.rel (%p2890) target = $region84
        $region83: #{tpu_custom_call.1} parent=79 // pred_region
          %s2893 = sand.u32 %s265, 1
          %s2894 = scalar_lea.sflag [#allocation5], %s2893
          %s2895 = sand.u32 %s265, 1
          %s2896 = smul.addr %s2895, 64
          %s2897 = scalar_lea.vmem [#allocation8], %s2896
          %2899 = dma.done %s2894, 1024
        $region84: #{tpu_custom_call.1} parent=79 // pred_fallthru
          _
      $region80: #{tpu_custom_call.1} parent=5 // pred_fallthru
        _
    $region6: #{tpu_custom_call.1} parent=1 // loop_footer
      %s28 = sadd.s32 1, %s24
    $region7: #{tpu_custom_call.1} parent=1 // loop_footer_branch
      %23 = sbr.rel target = $region3
    $region8: #{tpu_custom_call.1} parent=1 // loop_exit
      _
    %2900 = vsyncpa [#allocation4], 1
    %s2901 = scalar_lea.sflag [#allocation4], 1
    %2902 = vsyncpa %s2901, 1
    %2903 = vsyncpa [#allocation7], 1
    %s2904 = scalar_lea.sflag [#allocation7], 1
    %2905 = vsyncpa %s2904, 1
    %2906 = vsyncpa [#allocation5], 1
    %s2907 = scalar_lea.sflag [#allocation5], 1
    %2908 = vsyncpa %s2907, 1

</llo_original>
